<compile_context>
chip_gen: v7x
topology: tpu7x:2x2x1
jax: 0.10.0
libtpu: 0.0.40
codegen_flags: <defaults>
</compile_context>

<pallas_src>
import functools

import numpy as np
import jax
import jax.numpy as jnp
from jax import lax
from jax.experimental import pallas as pl
from jax.experimental.pallas import tpu as pltpu

CIN = 3               # RGB input
C1 = 8                # backbone stage-1 channels
C2 = 16               # backbone stage-2 channels (= feat_channels seen by the head)
DET_NUM_CLASSES = 12  # DetNet default det_num_classes


# ---------------------------------------------------------------------------
# Fused kernel: backbone (2x conv3x3-s2 + ReLU) + det head (conv3x3+ReLU -> 1x1)
# ---------------------------------------------------------------------------
def _detnet_kernel(z0_ref, w1_ref, b1_ref, w2_ref, b2_ref, w3_ref, b3_ref,
                   w4_ref, b4_ref, o_ref, pad1_ref, pad2_ref, *, Hb, Wb):
    """One sample per grid step; all intermediates stay in VMEM/registers.

    Every conv is a stride-1 block conv: shifted patches are concatenated along
    the channel axis and contracted in a single (HW, K) x (K, Cout) matmul.
    """
    HW = Hb * Wb

    def conv(src, taps, w_ref, b_ref, relu):
        col = jnp.concatenate([src(di, dj) for di, dj in taps], axis=-1)
        col = col.reshape(HW, col.shape[-1])          # single im2col reshape
        y = jnp.dot(col, w_ref[...], preferred_element_type=jnp.float32)
        y = y + b_ref[...]
        return jnp.maximum(y, 0.0) if relu else y     # (HW, Cout)

    taps2 = [(0, 0), (0, 1), (1, 0), (1, 1)]
    taps3 = [(i, j) for i in range(3) for j in range(3)]

    # backbone conv1: 3x3 stride-2 -> 2x2 block conv over the s2d(4) input (K=192)
    f1 = conv(lambda di, dj: z0_ref[di:di + Hb, dj:dj + Wb, :],
              taps2, w1_ref, b1_ref, relu=True)       # (HW, 4*C1)

    # backbone conv2: 3x3 stride-2 -> 2x2 block conv (K=128); zero padding fused
    # into the kernel via a zero-initialised VMEM scratch (one block top/left)
    pad1_ref[...] = jnp.zeros_like(pad1_ref)
    pad1_ref[1:Hb + 1, 1:Wb + 1, :] = f1.reshape(Hb, Wb, f1.shape[-1])
    f2 = conv(lambda di, dj: pad1_ref[di:di + Hb, dj:dj + Wb, :],
              taps2, w2_ref, b2_ref, relu=True)       # (HW, C2)

    # det head conv: 3x3 stride-1 at feature resolution (K=144)
    pad2_ref[...] = jnp.zeros_like(pad2_ref)
    pad2_ref[1:Hb + 1, 1:Wb + 1, :] = f2.reshape(Hb, Wb, f2.shape[-1])
    f3 = conv(lambda di, dj: pad2_ref[di:di + Hb, dj:dj + Wb, :],
              taps3, w3_ref, b3_ref, relu=True)       # (HW, C2)

    # det head 1x1 projection to per-location class logits
    logits = jnp.dot(f3, w4_ref[...], preferred_element_type=jnp.float32)
    o_ref[...] = (logits + b4_ref[...]).astype(o_ref.dtype)


# ---------------------------------------------------------------------------
# Exact weight rearrangements: 3x3 stride-2 conv -> 2x2 stride-1 block conv
# ---------------------------------------------------------------------------
def _conv1_block_weight(w):
    """(3,3,Cin,Co) s2 conv -> (2*2*16*Cin, 4*Co) block weight.

    Acts on the space-to-depth(4) input (channel = (pi*4+pj)*Cin + c) and emits
    the conv output in space-to-depth(2) form (channel = (di*2+dj)*Co + co).
    """
    Cin, Co = w.shape[2], w.shape[3]
    wb = jnp.zeros((2, 2, 16 * Cin, 4 * Co), jnp.float32)
    for d1i in range(2):
        for kh in range(3):
            q = 2 * d1i + kh - 1                      # input row offset within block
            Di, pi = (0, 3) if q < 0 else (1, q)
            for d1j in range(2):
                for kw in range(3):
                    r = 2 * d1j + kw - 1
                    Dj, pj = (0, 3) if r < 0 else (1, r)
                    ci = (pi * 4 + pj) * Cin
                    co = (d1i * 2 + d1j) * Co
                    wb = wb.at[Di, Dj, ci:ci + Cin, co:co + Co].set(w[kh, kw])
    return wb.reshape(4 * 16 * Cin, 4 * Co)


def _conv2_block_weight(w):
    """(3,3,Ci,Co) s2 conv over an s2d(2) input -> (2*2*4*Ci, Co) block weight."""
    Ci, Co = w.shape[2], w.shape[3]
    tap = {0: (0, 1), 1: (1, 0), 2: (1, 1)}           # kernel offset -> (block, phase)
    wb = jnp.zeros((2, 2, 4 * Ci, Co), jnp.float32)
    for kh in range(3):
        Di, pi = tap[kh]
        for kw in range(3):
            Dj, pj = tap[kw]
            ci = (pi * 2 + pj) * Ci
            wb = wb.at[Di, Dj, ci:ci + Ci, :].set(w[kh, kw])
    return wb.reshape(4 * 4 * Ci, Co)


# ---------------------------------------------------------------------------
# DetNet forward (Net(backbone, obj_det_head) -> list with one head output)
# ---------------------------------------------------------------------------
def detnet_forward(x_nchw, params):
    N, Cin, H, W = x_nchw.shape
    assert Cin == CIN and H % 4 == 0 and W % 4 == 0
    Hb, Wb = H // 4, W // 4

    # NCHW -> NHWC, pad 4 zero rows/cols at top/left (1 px of real conv padding +
    # 3 never-read zeros), then space-to-depth(4): both stride-2 convs become
    # stride-1 block convs inside the kernel.
    x = jnp.transpose(x_nchw, (0, 2, 3, 1)).astype(jnp.float32)
    xp = jnp.pad(x, ((0, 0), (4, 0), (4, 0), (0, 0)))
    z0 = (xp.reshape(N, Hb + 1, 4, Wb + 1, 4, CIN)
            .transpose(0, 1, 3, 2, 4, 5)
            .reshape(N, Hb + 1, Wb + 1, 16 * CIN))

    # Pre-flattened im2col weights (one (taps*Cin, Cout) matmul per conv).
    w1 = _conv1_block_weight(params["bb1_w"])                       # (192, 32)
    b1 = jnp.tile(params["bb1_b"], 4).reshape(1, 4 * C1)
    w2 = _conv2_block_weight(params["bb2_w"])                       # (128, 16)
    b2 = params["bb2_b"].reshape(1, C2)
    w3 = params["det1_w"].reshape(9 * C2, C2)                       # (144, 16)
    b3 = params["det1_b"].reshape(1, C2)
    w4 = params["det2_w"]                                           # (16, 12)
    b4 = params["det2_b"].reshape(1, DET_NUM_CLASSES)

    kernel = functools.partial(_detnet_kernel, Hb=Hb, Wb=Wb)
    const = lambda n: (0, 0)
    out = pl.pallas_call(
        kernel,
        out_shape=jax.ShapeDtypeStruct((N, Hb * Wb, DET_NUM_CLASSES), jnp.float32),
        grid=(N,),
        in_specs=[
            pl.BlockSpec((None, Hb + 1, Wb + 1, 16 * CIN), lambda n: (n, 0, 0, 0)),
            pl.BlockSpec(w1.shape, const), pl.BlockSpec(b1.shape, const),
            pl.BlockSpec(w2.shape, const), pl.BlockSpec(b2.shape, const),
            pl.BlockSpec(w3.shape, const), pl.BlockSpec(b3.shape, const),
            pl.BlockSpec(w4.shape, const), pl.BlockSpec(b4.shape, const),
        ],
        out_specs=pl.BlockSpec((None, Hb * Wb, DET_NUM_CLASSES),
                               lambda n: (n, 0, 0)),
        scratch_shapes=[
            pltpu.VMEM((Hb + 1, Wb + 1, 4 * C1), jnp.float32),  # conv2 padded input
            pltpu.VMEM((Hb + 2, Wb + 2, C2), jnp.float32),      # head-conv padded input
        ],
        compiler_params=pltpu.CompilerParams(
            dimension_semantics=("parallel",)),   # v7x: batch across both TCs
    )(z0, w1, b1, w2, b2, w3, b3, w4, b4)

    det = jnp.transpose(out, (0, 2, 1)).reshape(N, DET_NUM_CLASSES, Hb, Wb)
    return [det]                                   # Net.forward returns a list


# ---------------------------------------------------------------------------
# Deterministic stand-in parameters + pure-XLA reference for validation
# ---------------------------------------------------------------------------
def init_params(key):
    ks = jax.random.split(key, 8)

    def conv_w(k, kh, kw, cin, cout):
        fan_in = kh * kw * cin
        return (jax.random.normal(k, (kh, kw, cin, cout), jnp.float32)
                / np.float32(np.sqrt(fan_in)))

    return {
        "bb1_w": conv_w(ks[0], 3, 3, CIN, C1),
        "bb1_b": 0.1 * jax.random.normal(ks[1], (C1,), jnp.float32),
        "bb2_w": conv_w(ks[2], 3, 3, C1, C2),
        "bb2_b": 0.1 * jax.random.normal(ks[3], (C2,), jnp.float32),
        "det1_w": conv_w(ks[4], 3, 3, C2, C2),
        "det1_b": 0.1 * jax.random.normal(ks[5], (C2,), jnp.float32),
        "det2_w": (jax.random.normal(ks[6], (C2, DET_NUM_CLASSES), jnp.float32)
                   / np.float32(np.sqrt(C2))),
        "det2_b": 0.1 * jax.random.normal(ks[7], (DET_NUM_CLASSES,), jnp.float32),
    }


def _reference_forward(x_nchw, params):
    x = jnp.transpose(x_nchw, (0, 2, 3, 1)).astype(jnp.float32)

    def conv3x3(x, w, b, stride, relu):
        y = lax.conv_general_dilated(
            x, w, window_strides=(stride, stride), padding=((1, 1), (1, 1)),
            dimension_numbers=("NHWC", "HWIO", "NHWC"),
            precision=lax.Precision.HIGHEST) + b
        return jnp.maximum(y, 0.0) if relu else y

    f = conv3x3(x, params["bb1_w"], params["bb1_b"], 2, True)
    f = conv3x3(f, params["bb2_w"], params["bb2_b"], 2, True)
    h = conv3x3(f, params["det1_w"], params["det1_b"], 1, True)
    logits = jnp.einsum("nhwc,cd->nhwd", h, params["det2_w"],
                        precision=lax.Precision.HIGHEST) + params["det2_b"]
    return jnp.transpose(logits, (0, 3, 1, 2))


if __name__ == "__main__":
    key = jax.random.PRNGKey(0)
    pkey, xkey = jax.random.split(key)
    params = init_params(pkey)
    x = jax.random.normal(xkey, (2, CIN, 16, 16), jnp.float32)      # NCHW input

    outs = jax.jit(detnet_forward)(x, params)
    jax.block_until_ready(outs)

    assert isinstance(outs, list) and len(outs) == 1
    det = outs[0]
    assert det.shape == (2, DET_NUM_CLASSES, 4, 4)
    assert det.dtype == jnp.float32

    ref = jax.jit(_reference_forward)(x, params)
    np.testing.assert_allclose(np.asarray(det), np.asarray(ref),
                               rtol=3e-2, atol=3e-2)
    print("KERNEL_OK")
</pallas_src>

<mosaic_0001>
module attributes {stable_mosaic.version = 11 : i64} {
  func.func @_detnet_kernel(%arg0: i32, %arg1: memref<1x5x5x48xf32, #tpu.memory_space<vmem>>, %arg2: memref<192x32xf32, #tpu.memory_space<vmem>>, %arg3: memref<1x32xf32, #tpu.memory_space<vmem>>, %arg4: memref<128x16xf32, #tpu.memory_space<vmem>>, %arg5: memref<1x16xf32, #tpu.memory_space<vmem>>, %arg6: memref<144x16xf32, #tpu.memory_space<vmem>>, %arg7: memref<1x16xf32, #tpu.memory_space<vmem>>, %arg8: memref<16x12xf32, #tpu.memory_space<vmem>>, %arg9: memref<1x12xf32, #tpu.memory_space<vmem>>, %arg10: memref<1x16x12xf32, #tpu.memory_space<vmem>>, %arg11: memref<5x5x32xf32, #tpu.memory_space<vmem>>, %arg12: memref<6x6x16xf32, #tpu.memory_space<vmem>>) attributes {dimension_semantics = [#tpu.dimension_semantics<parallel>], iteration_bounds = array<i64: 2>, scalar_prefetch = 0 : i64, scratch_operands = 2 : i64, tpu.core_type = #tpu.core_type<tc>, window_params = [{transform_indices = @transform_0, window_bounds = array<i64: 1, 5, 5, 48>}, {pipeline_mode = #tpu.pipeline_mode<synchronous>, transform_indices = @transform_1, window_bounds = array<i64: 192, 32>}, {pipeline_mode = #tpu.pipeline_mode<synchronous>, transform_indices = @transform_2, window_bounds = array<i64: 1, 32>}, {pipeline_mode = #tpu.pipeline_mode<synchronous>, transform_indices = @transform_3, window_bounds = array<i64: 128, 16>}, {pipeline_mode = #tpu.pipeline_mode<synchronous>, transform_indices = @transform_4, window_bounds = array<i64: 1, 16>}, {pipeline_mode = #tpu.pipeline_mode<synchronous>, transform_indices = @transform_5, window_bounds = array<i64: 144, 16>}, {pipeline_mode = #tpu.pipeline_mode<synchronous>, transform_indices = @transform_6, window_bounds = array<i64: 1, 16>}, {pipeline_mode = #tpu.pipeline_mode<synchronous>, transform_indices = @transform_7, window_bounds = array<i64: 16, 12>}, {pipeline_mode = #tpu.pipeline_mode<synchronous>, transform_indices = @transform_8, window_bounds = array<i64: 1, 12>}, {transform_indices = @transform_9, window_bounds = array<i64: 1, 16, 12>}]} {
    %c0 = arith.constant 0 : index
    %c0_0 = arith.constant 0 : index
    %c0_1 = arith.constant 0 : index
    %c0_2 = arith.constant 0 : index
    %0 = vector.load %arg1[%c0, %c0_0, %c0_1, %c0_2] : memref<1x5x5x48xf32, #tpu.memory_space<vmem>>, vector<1x4x4x48xf32>
    %1 = vector.shape_cast %0 : vector<1x4x4x48xf32> to vector<4x4x48xf32>
    %c0_3 = arith.constant 0 : index
    %c0_4 = arith.constant 0 : index
    %c1 = arith.constant 1 : index
    %c0_5 = arith.constant 0 : index
    %2 = vector.load %arg1[%c0_3, %c0_4, %c1, %c0_5] : memref<1x5x5x48xf32, #tpu.memory_space<vmem>>, vector<1x4x4x48xf32>
    %3 = vector.shape_cast %2 : vector<1x4x4x48xf32> to vector<4x4x48xf32>
    %c0_6 = arith.constant 0 : index
    %c1_7 = arith.constant 1 : index
    %c0_8 = arith.constant 0 : index
    %c0_9 = arith.constant 0 : index
    %4 = vector.load %arg1[%c0_6, %c1_7, %c0_8, %c0_9] : memref<1x5x5x48xf32, #tpu.memory_space<vmem>>, vector<1x4x4x48xf32>
    %5 = vector.shape_cast %4 : vector<1x4x4x48xf32> to vector<4x4x48xf32>
    %c0_10 = arith.constant 0 : index
    %c1_11 = arith.constant 1 : index
    %c1_12 = arith.constant 1 : index
    %c0_13 = arith.constant 0 : index
    %6 = vector.load %arg1[%c0_10, %c1_11, %c1_12, %c0_13] : memref<1x5x5x48xf32, #tpu.memory_space<vmem>>, vector<1x4x4x48xf32>
    %7 = vector.shape_cast %6 : vector<1x4x4x48xf32> to vector<4x4x48xf32>
    %8 = tpu.concatenate %1, %3, %5, %7 in 2 : vector<4x4x48xf32>, vector<4x4x48xf32>, vector<4x4x48xf32>, vector<4x4x48xf32> -> vector<4x4x192xf32>
    %9 = vector.shape_cast %8 : vector<4x4x192xf32> to vector<16x192xf32>
    %c0_14 = arith.constant 0 : index
    %c0_15 = arith.constant 0 : index
    %10 = vector.load %arg2[%c0_14, %c0_15] : memref<192x32xf32, #tpu.memory_space<vmem>>, vector<192x32xf32>
    %cst = arith.constant dense<0.000000e+00> : vector<16x32xf32>
    %11 = tpu.matmul %9, %10, %cst {dimension_numbers = #tpu.dot_dimension_numbers<[1], [0], [0], [1], [0, 0, 1, 1], [], []>} : vector<16x192xf32>, vector<192x32xf32>, vector<16x32xf32> -> vector<16x32xf32>
    %c0_16 = arith.constant 0 : index
    %c0_17 = arith.constant 0 : index
    %12 = vector.load %arg3[%c0_16, %c0_17] : memref<1x32xf32, #tpu.memory_space<vmem>>, vector<1x32xf32>
    %13 = vector.broadcast %12 : vector<1x32xf32> to vector<16x32xf32>
    %14 = arith.addf %11, %13 : vector<16x32xf32>
    %cst_18 = arith.constant 0.000000e+00 : f32
    %15 = vector.broadcast %cst_18 : f32 to vector<16x32xf32>
    %16 = arith.maximumf %14, %15 : vector<16x32xf32>
    %cst_19 = arith.constant 0.000000e+00 : f32
    %17 = vector.broadcast %cst_19 : f32 to vector<5x5x32xf32>
    %c0_20 = arith.constant 0 : index
    %c0_21 = arith.constant 0 : index
    %c0_22 = arith.constant 0 : index
    %18 = vector.load %arg11[%c0_20, %c0_21, %c0_22] : memref<5x5x32xf32, #tpu.memory_space<vmem>>, vector<5x5x32xf32>
    tpu.vector_store %arg11[%c0_20, %c0_21, %c0_22], %17 {strides = array<i32>} : memref<5x5x32xf32, #tpu.memory_space<vmem>>, vector<5x5x32xf32>,
    %19 = vector.shape_cast %16 : vector<16x32xf32> to vector<4x4x32xf32>
    %c1_23 = arith.constant 1 : index
    %c1_24 = arith.constant 1 : index
    %c0_25 = arith.constant 0 : index
    %20 = vector.load %arg11[%c1_23, %c1_24, %c0_25] : memref<5x5x32xf32, #tpu.memory_space<vmem>>, vector<4x4x32xf32>
    tpu.vector_store %arg11[%c1_23, %c1_24, %c0_25], %19 {strides = array<i32>} : memref<5x5x32xf32, #tpu.memory_space<vmem>>, vector<4x4x32xf32>,
    %c0_26 = arith.constant 0 : index
    %c0_27 = arith.constant 0 : index
    %c0_28 = arith.constant 0 : index
    %21 = vector.load %arg11[%c0_26, %c0_27, %c0_28] : memref<5x5x32xf32, #tpu.memory_space<vmem>>, vector<4x4x32xf32>
    %c0_29 = arith.constant 0 : index
    %c1_30 = arith.constant 1 : index
    %c0_31 = arith.constant 0 : index
    %22 = vector.load %arg11[%c0_29, %c1_30, %c0_31] : memref<5x5x32xf32, #tpu.memory_space<vmem>>, vector<4x4x32xf32>
    %c1_32 = arith.constant 1 : index
    %c0_33 = arith.constant 0 : index
    %c0_34 = arith.constant 0 : index
    %23 = vector.load %arg11[%c1_32, %c0_33, %c0_34] : memref<5x5x32xf32, #tpu.memory_space<vmem>>, vector<4x4x32xf32>
    %c1_35 = arith.constant 1 : index
    %c1_36 = arith.constant 1 : index
    %c0_37 = arith.constant 0 : index
    %24 = vector.load %arg11[%c1_35, %c1_36, %c0_37] : memref<5x5x32xf32, #tpu.memory_space<vmem>>, vector<4x4x32xf32>
    %25 = tpu.concatenate %21, %22, %23, %24 in 2 : vector<4x4x32xf32>, vector<4x4x32xf32>, vector<4x4x32xf32>, vector<4x4x32xf32> -> vector<4x4x128xf32>
    %26 = vector.shape_cast %25 : vector<4x4x128xf32> to vector<16x128xf32>
    %c0_38 = arith.constant 0 : index
    %c0_39 = arith.constant 0 : index
    %27 = vector.load %arg4[%c0_38, %c0_39] : memref<128x16xf32, #tpu.memory_space<vmem>>, vector<128x16xf32>
    %cst_40 = arith.constant dense<0.000000e+00> : vector<16x16xf32>
    %28 = tpu.matmul %26, %27, %cst_40 {dimension_numbers = #tpu.dot_dimension_numbers<[1], [0], [0], [1], [0, 0, 1, 1], [], []>} : vector<16x128xf32>, vector<128x16xf32>, vector<16x16xf32> -> vector<16x16xf32>
    %c0_41 = arith.constant 0 : index
    %c0_42 = arith.constant 0 : index
    %29 = vector.load %arg5[%c0_41, %c0_42] : memref<1x16xf32, #tpu.memory_space<vmem>>, vector<1x16xf32>
    %30 = vector.broadcast %29 : vector<1x16xf32> to vector<16x16xf32>
    %31 = arith.addf %28, %30 : vector<16x16xf32>
    %cst_43 = arith.constant 0.000000e+00 : f32
    %32 = vector.broadcast %cst_43 : f32 to vector<16x16xf32>
    %33 = arith.maximumf %31, %32 : vector<16x16xf32>
    %cst_44 = arith.constant 0.000000e+00 : f32
    %34 = vector.broadcast %cst_44 : f32 to vector<6x6x16xf32>
    %c0_45 = arith.constant 0 : index
    %c0_46 = arith.constant 0 : index
    %c0_47 = arith.constant 0 : index
    %35 = vector.load %arg12[%c0_45, %c0_46, %c0_47] : memref<6x6x16xf32, #tpu.memory_space<vmem>>, vector<6x6x16xf32>
    tpu.vector_store %arg12[%c0_45, %c0_46, %c0_47], %34 {strides = array<i32>} : memref<6x6x16xf32, #tpu.memory_space<vmem>>, vector<6x6x16xf32>,
    %36 = vector.shape_cast %33 : vector<16x16xf32> to vector<4x4x16xf32>
    %c1_48 = arith.constant 1 : index
    %c1_49 = arith.constant 1 : index
    %c0_50 = arith.constant 0 : index
    %37 = vector.load %arg12[%c1_48, %c1_49, %c0_50] : memref<6x6x16xf32, #tpu.memory_space<vmem>>, vector<4x4x16xf32>
    tpu.vector_store %arg12[%c1_48, %c1_49, %c0_50], %36 {strides = array<i32>} : memref<6x6x16xf32, #tpu.memory_space<vmem>>, vector<4x4x16xf32>,
    %c0_51 = arith.constant 0 : index
    %c0_52 = arith.constant 0 : index
    %c0_53 = arith.constant 0 : index
    %38 = vector.load %arg12[%c0_51, %c0_52, %c0_53] : memref<6x6x16xf32, #tpu.memory_space<vmem>>, vector<4x4x16xf32>
    %c0_54 = arith.constant 0 : index
    %c1_55 = arith.constant 1 : index
    %c0_56 = arith.constant 0 : index
    %39 = vector.load %arg12[%c0_54, %c1_55, %c0_56] : memref<6x6x16xf32, #tpu.memory_space<vmem>>, vector<4x4x16xf32>
    %c0_57 = arith.constant 0 : index
    %c2 = arith.constant 2 : index
    %c0_58 = arith.constant 0 : index
    %40 = vector.load %arg12[%c0_57, %c2, %c0_58] : memref<6x6x16xf32, #tpu.memory_space<vmem>>, vector<4x4x16xf32>
    %c1_59 = arith.constant 1 : index
    %c0_60 = arith.constant 0 : index
    %c0_61 = arith.constant 0 : index
    %41 = vector.load %arg12[%c1_59, %c0_60, %c0_61] : memref<6x6x16xf32, #tpu.memory_space<vmem>>, vector<4x4x16xf32>
    %c1_62 = arith.constant 1 : index
    %c1_63 = arith.constant 1 : index
    %c0_64 = arith.constant 0 : index
    %42 = vector.load %arg12[%c1_62, %c1_63, %c0_64] : memref<6x6x16xf32, #tpu.memory_space<vmem>>, vector<4x4x16xf32>
    %c1_65 = arith.constant 1 : index
    %c2_66 = arith.constant 2 : index
    %c0_67 = arith.constant 0 : index
    %43 = vector.load %arg12[%c1_65, %c2_66, %c0_67] : memref<6x6x16xf32, #tpu.memory_space<vmem>>, vector<4x4x16xf32>
    %c2_68 = arith.constant 2 : index
    %c0_69 = arith.constant 0 : index
    %c0_70 = arith.constant 0 : index
    %44 = vector.load %arg12[%c2_68, %c0_69, %c0_70] : memref<6x6x16xf32, #tpu.memory_space<vmem>>, vector<4x4x16xf32>
    %c2_71 = arith.constant 2 : index
    %c1_72 = arith.constant 1 : index
    %c0_73 = arith.constant 0 : index
    %45 = vector.load %arg12[%c2_71, %c1_72, %c0_73] : memref<6x6x16xf32, #tpu.memory_space<vmem>>, vector<4x4x16xf32>
    %c2_74 = arith.constant 2 : index
    %c2_75 = arith.constant 2 : index
    %c0_76 = arith.constant 0 : index
    %46 = vector.load %arg12[%c2_74, %c2_75, %c0_76] : memref<6x6x16xf32, #tpu.memory_space<vmem>>, vector<4x4x16xf32>
    %47 = tpu.concatenate %38, %39, %40, %41, %42, %43, %44, %45, %46 in 2 : vector<4x4x16xf32>, vector<4x4x16xf32>, vector<4x4x16xf32>, vector<4x4x16xf32>, vector<4x4x16xf32>, vector<4x4x16xf32>, vector<4x4x16xf32>, vector<4x4x16xf32>, vector<4x4x16xf32> -> vector<4x4x144xf32>
    %48 = vector.shape_cast %47 : vector<4x4x144xf32> to vector<16x144xf32>
    %c0_77 = arith.constant 0 : index
    %c0_78 = arith.constant 0 : index
    %49 = vector.load %arg6[%c0_77, %c0_78] : memref<144x16xf32, #tpu.memory_space<vmem>>, vector<144x16xf32>
    %cst_79 = arith.constant dense<0.000000e+00> : vector<16x16xf32>
    %50 = tpu.matmul %48, %49, %cst_79 {dimension_numbers = #tpu.dot_dimension_numbers<[1], [0], [0], [1], [0, 0, 1, 1], [], []>} : vector<16x144xf32>, vector<144x16xf32>, vector<16x16xf32> -> vector<16x16xf32>
    %c0_80 = arith.constant 0 : index
    %c0_81 = arith.constant 0 : index
    %51 = vector.load %arg7[%c0_80, %c0_81] : memref<1x16xf32, #tpu.memory_space<vmem>>, vector<1x16xf32>
    %52 = vector.broadcast %51 : vector<1x16xf32> to vector<16x16xf32>
    %53 = arith.addf %50, %52 : vector<16x16xf32>
    %cst_82 = arith.constant 0.000000e+00 : f32
    %54 = vector.broadcast %cst_82 : f32 to vector<16x16xf32>
    %55 = arith.maximumf %53, %54 : vector<16x16xf32>
    %c0_83 = arith.constant 0 : index
    %c0_84 = arith.constant 0 : index
    %56 = vector.load %arg8[%c0_83, %c0_84] : memref<16x12xf32, #tpu.memory_space<vmem>>, vector<16x12xf32>
    %cst_85 = arith.constant dense<0.000000e+00> : vector<16x12xf32>
    %57 = tpu.matmul %55, %56, %cst_85 {dimension_numbers = #tpu.dot_dimension_numbers<[1], [0], [0], [1], [0, 0, 1, 1], [], []>} : vector<16x16xf32>, vector<16x12xf32>, vector<16x12xf32> -> vector<16x12xf32>
    %c0_86 = arith.constant 0 : index
    %c0_87 = arith.constant 0 : index
    %58 = vector.load %arg9[%c0_86, %c0_87] : memref<1x12xf32, #tpu.memory_space<vmem>>, vector<1x12xf32>
    %59 = vector.broadcast %58 : vector<1x12xf32> to vector<16x12xf32>
    %60 = arith.addf %57, %59 : vector<16x12xf32>
    %c0_88 = arith.constant 0 : index
    %c0_89 = arith.constant 0 : index
    %c0_90 = arith.constant 0 : index
    %61 = vector.load %arg10[%c0_88, %c0_89, %c0_90] : memref<1x16x12xf32, #tpu.memory_space<vmem>>, vector<1x16x12xf32>
    %62 = vector.shape_cast %61 : vector<1x16x12xf32> to vector<16x12xf32>
    %63 = vector.shape_cast %60 : vector<16x12xf32> to vector<1x16x12xf32>
    tpu.vector_store %arg10[%c0_88, %c0_89, %c0_90], %63 {strides = array<i32>} : memref<1x16x12xf32, #tpu.memory_space<vmem>>, vector<1x16x12xf32>,
    return
  }
  func.func @transform_0(%arg0: i32) -> (i32, i32, i32, i32) {
    %c0_i32 = arith.constant 0 : i32
    %c0_i32_0 = arith.constant 0 : i32
    %c0_i32_1 = arith.constant 0 : i32
    %c0_i32_2 = arith.constant 0 : i32
    return %arg0, %c0_i32, %c0_i32_0, %c0_i32_1 : i32, i32, i32, i32
  }
  func.func @transform_1(%arg0: i32) -> (i32, i32) {
    %c0_i32 = arith.constant 0 : i32
    %c0_i32_0 = arith.constant 0 : i32
    %c0_i32_1 = arith.constant 0 : i32
    return %c0_i32, %c0_i32_0 : i32, i32
  }
  func.func @transform_2(%arg0: i32) -> (i32, i32) {
    %c0_i32 = arith.constant 0 : i32
    %c0_i32_0 = arith.constant 0 : i32
    %c0_i32_1 = arith.constant 0 : i32
    return %c0_i32, %c0_i32_0 : i32, i32
  }
  func.func @transform_3(%arg0: i32) -> (i32, i32) {
    %c0_i32 = arith.constant 0 : i32
    %c0_i32_0 = arith.constant 0 : i32
    %c0_i32_1 = arith.constant 0 : i32
    return %c0_i32, %c0_i32_0 : i32, i32
  }
  func.func @transform_4(%arg0: i32) -> (i32, i32) {
    %c0_i32 = arith.constant 0 : i32
    %c0_i32_0 = arith.constant 0 : i32
    %c0_i32_1 = arith.constant 0 : i32
    return %c0_i32, %c0_i32_0 : i32, i32
  }
  func.func @transform_5(%arg0: i32) -> (i32, i32) {
    %c0_i32 = arith.constant 0 : i32
    %c0_i32_0 = arith.constant 0 : i32
    %c0_i32_1 = arith.constant 0 : i32
    return %c0_i32, %c0_i32_0 : i32, i32
  }
  func.func @transform_6(%arg0: i32) -> (i32, i32) {
    %c0_i32 = arith.constant 0 : i32
    %c0_i32_0 = arith.constant 0 : i32
    %c0_i32_1 = arith.constant 0 : i32
    return %c0_i32, %c0_i32_0 : i32, i32
  }
  func.func @transform_7(%arg0: i32) -> (i32, i32) {
    %c0_i32 = arith.constant 0 : i32
    %c0_i32_0 = arith.constant 0 : i32
    %c0_i32_1 = arith.constant 0 : i32
    return %c0_i32, %c0_i32_0 : i32, i32
  }
  func.func @transform_8(%arg0: i32) -> (i32, i32) {
    %c0_i32 = arith.constant 0 : i32
    %c0_i32_0 = arith.constant 0 : i32
    %c0_i32_1 = arith.constant 0 : i32
    return %c0_i32, %c0_i32_0 : i32, i32
  }
  func.func @transform_9(%arg0: i32) -> (i32, i32, i32) {
    %c0_i32 = arith.constant 0 : i32
    %c0_i32_0 = arith.constant 0 : i32
    %c0_i32_1 = arith.constant 0 : i32
    return %arg0, %c0_i32, %c0_i32_0 : i32, i32, i32
  }
}

</mosaic_0001>

<llo_original>
// kernel: tile.8
$region0: #{tile.8}
  #allocation0 [shape = 's32[1]{0}', space=sflag, size = 0x4, scoped, tag = 'scoped memory for tile.8']
  %s0 = inlined_call_operand.vmem [shape: f32[8], index: 0, kind: input, shape index: {}]
  %s1 = inlined_call_operand.vmem [shape: f32[4,8], index: 1, kind: output, shape index: {}]
  // Predicated region
  $region2: #{tile.8} parent=0 // pred_check
    _
  $region3: #{tile.8} parent=0 // pred_check_branch
    %3 = sbr.rel (0) target = $region5
  $region4: #{tile.8} parent=0 // pred_region
    _
  $region5: #{tile.8} parent=0 // pred_fallthru
    _
  %v4 = vld [vmem:[%s0] ss:$0 sm:$0xff]
  %5 = vst [vmem:[%s1] sm:$0xf] %v4

// kernel: tile.9
$region0: #{tile.9}
  %s0 = inlined_call_operand.vmem [shape: f32[4,8], index: 0, kind: input, shape index: {}]
  %s1 = inlined_call_operand.vmem [shape: f32[1,32], index: 1, kind: output, shape index: {}]
  $region1: #{tile.9} parent=0
    #allocation0 [shape = 'u8[4096]{0}', space=vmem, size = 0x1000, scoped, tag = 'scoped mem for output reshape']
    #allocation1 [shape = 'u8[4096]{0}', space=vmem, size = 0x1000, scoped, tag = 'scoped mem for input reshape']
    %s3 = sshllo.u32 0, 4
    %v4 = vld [vmem:[%s0] sm:%s3]
    %5 = vst [vmem:[#allocation1] sm:%s3] %v4
    %v6 = vld [vmem:[#allocation1] sm:$0x1]
    %vm7 = vcmask 64512
    %8 = vst.msk [vmem:[#allocation0] sm:$0x1] %vm7, %v6
    %s9 = scalar_lea.vmem [#allocation1], 3
    %v10 = vld [vmem:[%s9] sm:$0x1]
    %11 = vrot.lane.b32.xlu0 %v10, 24
    %v12 = vpop.permute.xlu0 %11
    %vm13 = vcmask 261312
    %14 = vst.msk [vmem:[#allocation0] sm:$0x1] %vm13, %v12
    %s15 = scalar_lea.vmem [#allocation1], 2
    %v16 = vld [vmem:[%s15] sm:$0x1]
    %17 = vrot.lane.b32.xlu0 %v16, 16
    %v18 = vpop.permute.xlu0 %17
    %vm19 = vcmask 195712
    %20 = vst.msk [vmem:[#allocation0] sm:$0x1] %vm19, %v18
    %s21 = scalar_lea.vmem [#allocation1], 1
    %v22 = vld [vmem:[%s21] sm:$0x1]
    %23 = vrot.lane.b32.xlu0 %v22, 8
    %v24 = vpop.permute.xlu0 %23
    %vm25 = vcmask 130112
    %26 = vst.msk [vmem:[#allocation0] sm:$0x1] %vm25, %v24
    %s28 = sshllo.u32 0, 1
    %v30 = vld [vmem:[#allocation0] sm:%s28]
    %s31 = sshllo.u32 0, 1
    %32 = vst [vmem:[%s1] sm:%s31] %v30

// kernel: detnet_forward.1
$region0: #{detnet_forward.1}
  #allocation0 [shape = 'u32[]', space=smem, size = 0x4, offset = 0x4, fixed_abs, tag = 'smem constant byte address 0x4 - core index']
  #allocation1 [shape = 'u32[144,128]{1,0:T(1,128)}', space=vmem, size = 0x12000, scoped, tag = 'internal scratch']
  #allocation2 [shape = 'f32[5,5,32]{2,1,0:T(8,128)}', space=vmem, size = 0x5000, scoped, tag = 'scratch operand']
  #allocation3 [shape = 'f32[6,6,16]{2,1,0:T(8,128)}', space=vmem, size = 0x6000, scoped, tag = 'scratch operand']
  %s0 = inlined_call_operand.vmem [shape: f32[2,5,5,48], index: 0, kind: input, shape index: {}]
  %s1 = inlined_call_operand.vmem [shape: f32[192,32], index: 1, kind: input, shape index: {}]
  %s2 = inlined_call_operand.vmem [shape: f32[1,32], index: 2, kind: input, shape index: {}]
  %s3 = inlined_call_operand.vmem [shape: f32[128,16], index: 3, kind: input, shape index: {}]
  %s4 = inlined_call_operand.vmem [shape: f32[1,16], index: 4, kind: input, shape index: {}]
  %s5 = inlined_call_operand.vmem [shape: f32[144,16], index: 5, kind: input, shape index: {}]
  %s6 = inlined_call_operand.vmem [shape: f32[1,16], index: 6, kind: input, shape index: {}]
  %s7 = inlined_call_operand.vmem [shape: f32[16,12], index: 7, kind: input, shape index: {}]
  %s8 = inlined_call_operand.vmem [shape: f32[1,12], index: 8, kind: input, shape index: {}]
  %s9 = inlined_call_operand.hbm [shape: f32[2,16,12], index: 9, kind: output, shape index: {}]
  %s10 = sld [smem:[#allocation0]]
  $region69: #{detnet_forward.1} parent=0
    _
  %s12 = ssub.s32 1, %s10
  %s13 = scalar_select 0, %s12, %s10
  $region1: #{detnet_forward.1} parent=0
    #allocation4 [shape = 'u8[16384]{0}', space=vmem, size = 0x4000, scoped, tag = 'output window, operand 0']
    #allocation5 [shape = 's32[2]{0}', space=sflag, size = 0x8, scoped, tag = 'scoped memory for detnet_forward.1']
    %14 = vsyncpa [#allocation5], 0
    %s15 = scalar_lea.sflag [#allocation5], 1
    %16 = vsyncpa %s15, 0
    loop: start=0, step=1, limit=4
    $region2: #{detnet_forward.1} parent=1 // loop_pre_header
      _
    $region3: #{detnet_forward.1} parent=1 // loop_header
      %s18 = sphi 0, %s22
      %p19 = scmp.ge.s32.totalorder %s18, 4
      %s28 = sphi 0, %s30
      %s31 = sphi 0, %s28
      %s32 = sphi 0, %s31
      %s48 = sphi 0, %s32
      %s52 = sphi 0, %s52
      %s54 = sphi 0, %s52
      %s55 = sphi 0, %s54
      %s69 = sphi 0, %s55
      %s73 = sphi 0, %s73
      %s75 = sphi 0, %s73
      %s76 = sphi 0, %s75
      %s90 = sphi 0, %s76
      %s94 = sphi 0, %s94
      %s96 = sphi 0, %s94
      %s97 = sphi 0, %s96
      %s111 = sphi 0, %s97
      %s115 = sphi 0, %s115
      %s117 = sphi 0, %s115
      %s118 = sphi 0, %s117
      %s132 = sphi 0, %s118
      %s136 = sphi 0, %s136
      %s138 = sphi 0, %s136
      %s139 = sphi 0, %s138
      %s153 = sphi 0, %s139
      %s157 = sphi 0, %s157
      %s159 = sphi 0, %s157
      %s160 = sphi 0, %s159
      %s174 = sphi 0, %s160
      %s178 = sphi 0, %s178
      %s180 = sphi 0, %s178
      %s181 = sphi 0, %s180
      %s195 = sphi 0, %s181
      %s199 = sphi 0, %s199
      %s201 = sphi 0, %s199
      %s202 = sphi 0, %s201
      %s216 = sphi 0, %s202
      %s222 = sphi 0, %s224
      %s225 = sphi 0, %s222
      %s226 = sphi 0, %s225
      %s242 = sphi 0, %s226
    $region4: #{detnet_forward.1} parent=1 // loop_header_branch
      %21 = sbr.rel (%p19) target = $region8
    $region5: #{detnet_forward.1} parent=1 // loop_body
      %s23 = ssub.s32 %s18, 1
      %s24 = ssub.s32 %s18, 2
      %s25 = sadd.s32 %s18, 1
      %s26 = ssub.s32 %s18, %s25
      %p27 = scmp.eq.s32.totalorder %s26, 0
      %s29 = sadd.s32 %s28, 1
      %s30 = scalar_select %p27, %s28, %s29
      %p33 = pneg %p27
      %p34 = scmp.eq.s32.totalorder %s18, 1
      %p35 = por %p33, %p34
      %p36 = scmp.ne.s32.totalorder %s28, %s31
      %p37 = scmp.eq.s32.totalorder %s18, 0
      %p38 = por %p36, %p37
      %p39 = scmp.ne.s32.totalorder %s28, %s31
      %p40 = scmp.eq.s32.totalorder %s23, 1
      %p41 = por %p39, %p40
      %p42 = scmp.ne.s32.totalorder %s31, %s32
      %p43 = scmp.eq.s32.totalorder %s23, 0
      %p44 = por %p42, %p43
      %p45 = scmp.ne.s32.totalorder %s31, %s32
      %p46 = scmp.eq.s32.totalorder %s24, 1
      %p47 = por %p45, %p46
      %p49 = scmp.ne.s32.totalorder %s32, %s48
      %p50 = scmp.eq.s32.totalorder %s24, 0
      %p51 = por %p49, %p50
      %s53 = sadd.s32 %s52, 1
      %p56 = scmp.eq.s32.totalorder %s18, 1
      %p57 = scmp.ne.s32.totalorder %s52, %s54
      %p58 = scmp.eq.s32.totalorder %s18, 0
      %p59 = por %p57, %p58
      %p60 = scmp.ne.s32.totalorder %s52, %s54
      %p61 = scmp.eq.s32.totalorder %s23, 1
      %p62 = por %p60, %p61
      %p63 = scmp.ne.s32.totalorder %s54, %s55
      %p64 = scmp.eq.s32.totalorder %s23, 0
      %p65 = por %p63, %p64
      %p66 = scmp.ne.s32.totalorder %s54, %s55
      %p67 = scmp.eq.s32.totalorder %s24, 1
      %p68 = por %p66, %p67
      %p70 = scmp.ne.s32.totalorder %s55, %s69
      %p71 = scmp.eq.s32.totalorder %s24, 0
      %p72 = por %p70, %p71
      %s74 = sadd.s32 %s73, 1
      %p77 = scmp.eq.s32.totalorder %s18, 1
      %p78 = scmp.ne.s32.totalorder %s73, %s75
      %p79 = scmp.eq.s32.totalorder %s18, 0
      %p80 = por %p78, %p79
      %p81 = scmp.ne.s32.totalorder %s73, %s75
      %p82 = scmp.eq.s32.totalorder %s23, 1
      %p83 = por %p81, %p82
      %p84 = scmp.ne.s32.totalorder %s75, %s76
      %p85 = scmp.eq.s32.totalorder %s23, 0
      %p86 = por %p84, %p85
      %p87 = scmp.ne.s32.totalorder %s75, %s76
      %p88 = scmp.eq.s32.totalorder %s24, 1
      %p89 = por %p87, %p88
      %p91 = scmp.ne.s32.totalorder %s76, %s90
      %p92 = scmp.eq.s32.totalorder %s24, 0
      %p93 = por %p91, %p92
      %s95 = sadd.s32 %s94, 1
      %p98 = scmp.eq.s32.totalorder %s18, 1
      %p99 = scmp.ne.s32.totalorder %s94, %s96
      %p100 = scmp.eq.s32.totalorder %s18, 0
      %p101 = por %p99, %p100
      %p102 = scmp.ne.s32.totalorder %s94, %s96
      %p103 = scmp.eq.s32.totalorder %s23, 1
      %p104 = por %p102, %p103
      %p105 = scmp.ne.s32.totalorder %s96, %s97
      %p106 = scmp.eq.s32.totalorder %s23, 0
      %p107 = por %p105, %p106
      %p108 = scmp.ne.s32.totalorder %s96, %s97
      %p109 = scmp.eq.s32.totalorder %s24, 1
      %p110 = por %p108, %p109
      %p112 = scmp.ne.s32.totalorder %s97, %s111
      %p113 = scmp.eq.s32.totalorder %s24, 0
      %p114 = por %p112, %p113
      %s116 = sadd.s32 %s115, 1
      %p119 = scmp.eq.s32.totalorder %s18, 1
      %p120 = scmp.ne.s32.totalorder %s115, %s117
      %p121 = scmp.eq.s32.totalorder %s18, 0
      %p122 = por %p120, %p121
      %p123 = scmp.ne.s32.totalorder %s115, %s117
      %p124 = scmp.eq.s32.totalorder %s23, 1
      %p125 = por %p123, %p124
      %p126 = scmp.ne.s32.totalorder %s117, %s118
      %p127 = scmp.eq.s32.totalorder %s23, 0
      %p128 = por %p126, %p127
      %p129 = scmp.ne.s32.totalorder %s117, %s118
      %p130 = scmp.eq.s32.totalorder %s24, 1
      %p131 = por %p129, %p130
      %p133 = scmp.ne.s32.totalorder %s118, %s132
      %p134 = scmp.eq.s32.totalorder %s24, 0
      %p135 = por %p133, %p134
      %s137 = sadd.s32 %s136, 1
      %p140 = scmp.eq.s32.totalorder %s18, 1
      %p141 = scmp.ne.s32.totalorder %s136, %s138
      %p142 = scmp.eq.s32.totalorder %s18, 0
      %p143 = por %p141, %p142
      %p144 = scmp.ne.s32.totalorder %s136, %s138
      %p145 = scmp.eq.s32.totalorder %s23, 1
      %p146 = por %p144, %p145
      %p147 = scmp.ne.s32.totalorder %s138, %s139
      %p148 = scmp.eq.s32.totalorder %s23, 0
      %p149 = por %p147, %p148
      %p150 = scmp.ne.s32.totalorder %s138, %s139
      %p151 = scmp.eq.s32.totalorder %s24, 1
      %p152 = por %p150, %p151
      %p154 = scmp.ne.s32.totalorder %s139, %s153
      %p155 = scmp.eq.s32.totalorder %s24, 0
      %p156 = por %p154, %p155
      %s158 = sadd.s32 %s157, 1
      %p161 = scmp.eq.s32.totalorder %s18, 1
      %p162 = scmp.ne.s32.totalorder %s157, %s159
      %p163 = scmp.eq.s32.totalorder %s18, 0
      %p164 = por %p162, %p163
      %p165 = scmp.ne.s32.totalorder %s157, %s159
      %p166 = scmp.eq.s32.totalorder %s23, 1
      %p167 = por %p165, %p166
      %p168 = scmp.ne.s32.totalorder %s159, %s160
      %p169 = scmp.eq.s32.totalorder %s23, 0
      %p170 = por %p168, %p169
      %p171 = scmp.ne.s32.totalorder %s159, %s160
      %p172 = scmp.eq.s32.totalorder %s24, 1
      %p173 = por %p171, %p172
      %p175 = scmp.ne.s32.totalorder %s160, %s174
      %p176 = scmp.eq.s32.totalorder %s24, 0
      %p177 = por %p175, %p176
      %s179 = sadd.s32 %s178, 1
      %p182 = scmp.eq.s32.totalorder %s18, 1
      %p183 = scmp.ne.s32.totalorder %s178, %s180
      %p184 = scmp.eq.s32.totalorder %s18, 0
      %p185 = por %p183, %p184
      %p186 = scmp.ne.s32.totalorder %s178, %s180
      %p187 = scmp.eq.s32.totalorder %s23, 1
      %p188 = por %p186, %p187
      %p189 = scmp.ne.s32.totalorder %s180, %s181
      %p190 = scmp.eq.s32.totalorder %s23, 0
      %p191 = por %p189, %p190
      %p192 = scmp.ne.s32.totalorder %s180, %s181
      %p193 = scmp.eq.s32.totalorder %s24, 1
      %p194 = por %p192, %p193
      %p196 = scmp.ne.s32.totalorder %s181, %s195
      %p197 = scmp.eq.s32.totalorder %s24, 0
      %p198 = por %p196, %p197
      %s200 = sadd.s32 %s199, 1
      %p203 = scmp.eq.s32.totalorder %s18, 1
      %p204 = scmp.ne.s32.totalorder %s199, %s201
      %p205 = scmp.eq.s32.totalorder %s18, 0
      %p206 = por %p204, %p205
      %p207 = scmp.ne.s32.totalorder %s199, %s201
      %p208 = scmp.eq.s32.totalorder %s23, 1
      %p209 = por %p207, %p208
      %p210 = scmp.ne.s32.totalorder %s201, %s202
      %p211 = scmp.eq.s32.totalorder %s23, 0
      %p212 = por %p210, %p211
      %p213 = scmp.ne.s32.totalorder %s201, %s202
      %p214 = scmp.eq.s32.totalorder %s24, 1
      %p215 = por %p213, %p214
      %p217 = scmp.ne.s32.totalorder %s202, %s216
      %p218 = scmp.eq.s32.totalorder %s24, 0
      %p219 = por %p217, %p218
      %s220 = ssub.s32 %s18, %s25
      %p221 = scmp.eq.s32.totalorder %s220, 0
      %s223 = sadd.s32 %s222, 1
      %s224 = scalar_select %p221, %s222, %s223
      %p227 = pneg %p221
      %p228 = scmp.eq.s32.totalorder %s18, 1
      %p229 = por %p227, %p228
      %p230 = scmp.ne.s32.totalorder %s222, %s225
      %p231 = scmp.eq.s32.totalorder %s18, 0
      %p232 = por %p230, %p231
      %p233 = scmp.ne.s32.totalorder %s222, %s225
      %p234 = scmp.eq.s32.totalorder %s23, 1
      %p235 = por %p233, %p234
      %p236 = scmp.ne.s32.totalorder %s225, %s226
      %p237 = scmp.eq.s32.totalorder %s23, 0
      %p238 = por %p236, %p237
      %p239 = scmp.ne.s32.totalorder %s225, %s226
      %p240 = scmp.eq.s32.totalorder %s24, 1
      %p241 = por %p239, %p240
      %p243 = scmp.ne.s32.totalorder %s226, %s242
      %p244 = scmp.eq.s32.totalorder %s24, 0
      %p245 = por %p243, %p244
      %p246 = scmp.le.s32.totalorder 1, %s18
      %p247 = scmp.lt.s32.totalorder %s18, 3
      %p248 = pnand %p246, %p247
      %p249 = pneg %p248
      // Predicated region
      $region9: #{detnet_forward.1} parent=5 // pred_check
        _
      $region10: #{detnet_forward.1} parent=5 // pred_check_branch
        %251 = sbr.rel (%p248) target = $region12
      $region11: #{detnet_forward.1} parent=5 // pred_region
        %s252 = ssub.s32 %s18, 1
        // Predicated region
        $region13: #{detnet_forward.1} parent=11 // pred_check
          %p253 = pneg %p65
        $region14: #{detnet_forward.1} parent=11 // pred_check_branch
          %255 = sbr.rel (%p253) target = $region16
        $region15: #{detnet_forward.1} parent=11 // pred_region
          _
        $region16: #{detnet_forward.1} parent=11 // pred_fallthru
          _
        // Predicated region
        $region17: #{detnet_forward.1} parent=11 // pred_check
          %p256 = pneg %p86
        $region18: #{detnet_forward.1} parent=11 // pred_check_branch
          %258 = sbr.rel (%p256) target = $region20
        $region19: #{detnet_forward.1} parent=11 // pred_region
          _
        $region20: #{detnet_forward.1} parent=11 // pred_fallthru
          _
        // Predicated region
        $region21: #{detnet_forward.1} parent=11 // pred_check
          %p259 = pneg %p107
        $region22: #{detnet_forward.1} parent=11 // pred_check_branch
          %261 = sbr.rel (%p259) target = $region24
        $region23: #{detnet_forward.1} parent=11 // pred_region
          _
        $region24: #{detnet_forward.1} parent=11 // pred_fallthru
          _
        // Predicated region
        $region25: #{detnet_forward.1} parent=11 // pred_check
          %p262 = pneg %p128
        $region26: #{detnet_forward.1} parent=11 // pred_check_branch
          %264 = sbr.rel (%p262) target = $region28
        $region27: #{detnet_forward.1} parent=11 // pred_region
          _
        $region28: #{detnet_forward.1} parent=11 // pred_fallthru
          _
        // Predicated region
        $region29: #{detnet_forward.1} parent=11 // pred_check
          %p265 = pneg %p149
        $region30: #{detnet_forward.1} parent=11 // pred_check_branch
          %267 = sbr.rel (%p265) target = $region32
        $region31: #{detnet_forward.1} parent=11 // pred_region
          _
        $region32: #{detnet_forward.1} parent=11 // pred_fallthru
          _
        // Predicated region
        $region33: #{detnet_forward.1} parent=11 // pred_check
          %p268 = pneg %p170
        $region34: #{detnet_forward.1} parent=11 // pred_check_branch
          %270 = sbr.rel (%p268) target = $region36
        $region35: #{detnet_forward.1} parent=11 // pred_region
          _
        $region36: #{detnet_forward.1} parent=11 // pred_fallthru
          _
        // Predicated region
        $region37: #{detnet_forward.1} parent=11 // pred_check
          %p271 = pneg %p191
        $region38: #{detnet_forward.1} parent=11 // pred_check_branch
          %273 = sbr.rel (%p271) target = $region40
        $region39: #{detnet_forward.1} parent=11 // pred_region
          _
        $region40: #{detnet_forward.1} parent=11 // pred_fallthru
          _
        // Predicated region
        $region41: #{detnet_forward.1} parent=11 // pred_check
          %p274 = pneg %p212
        $region42: #{detnet_forward.1} parent=11 // pred_check_branch
          %276 = sbr.rel (%p274) target = $region44
        $region43: #{detnet_forward.1} parent=11 // pred_region
          _
        $region44: #{detnet_forward.1} parent=11 // pred_fallthru
          _
      $region12: #{detnet_forward.1} parent=5 // pred_fallthru
        _
      %p277 = scmp.lt.s32.totalorder %s18, 2
      // Predicated region
      $region45: #{detnet_forward.1} parent=5 // pred_check
        %p278 = pneg %p277
      $region46: #{detnet_forward.1} parent=5 // pred_check_branch
        %280 = sbr.rel (%p278) target = $region48
      $region47: #{detnet_forward.1} parent=5 // pred_region
        // Predicated region
        $region49: #{detnet_forward.1} parent=47 // pred_check
          %p281 = pneg %p38
        $region50: #{detnet_forward.1} parent=47 // pred_check_branch
          %283 = sbr.rel (%p281) target = $region52
        $region51: #{detnet_forward.1} parent=47 // pred_region
          %p284 = scmp.lt.s32.totalorder %s18, 1
          %s285 = scalar_select %p284, %s18, 1
          %s286 = smul.addr %s285, 5
          %s287 = smul.addr %s286, 8
          %s288 = scalar_lea.vmem %s0, %s287
        $region52: #{detnet_forward.1} parent=47 // pred_fallthru
          _
      $region48: #{detnet_forward.1} parent=5 // pred_fallthru
        _
      %p289 = scmp.le.s32.totalorder 1, %s18
      %p290 = scmp.lt.s32.totalorder %s18, 3
      %p291 = pnand %p289, %p290
      %p292 = pneg %p291
      // Predicated region
      $region53: #{detnet_forward.1} parent=5 // pred_check
        _
      $region54: #{detnet_forward.1} parent=5 // pred_check_branch
        %294 = sbr.rel (%p291) target = $region56
      $region55: #{detnet_forward.1} parent=5 // pred_region
        %s295 = ssub.s32 %s18, 1
        %p296 = scmp.lt.s32.totalorder %s23, 1
        %s297 = scalar_select %p296, %s23, 1
        %s298 = smul.addr %s297, 5
        %s299 = smul.addr %s298, 8
        %s300 = scalar_lea.vmem %s0, %s299
        %p301 = pneg %p44
        %p302 = pneg %p41
        %p303 = pneg %p65
        %p304 = pneg %p62
        %p305 = pneg %p86
        %p306 = pneg %p83
        %p307 = pneg %p107
        %p308 = pneg %p104
        %p309 = pneg %p128
        %p310 = pneg %p125
        %p311 = pneg %p149
        %p312 = pneg %p146
        %p313 = pneg %p170
        %p314 = pneg %p167
        %p315 = pneg %p191
        %p316 = pneg %p188
        %p317 = pneg %p212
        %p318 = pneg %p209
        %p319 = pneg %p238
        %p320 = pneg %p235
        %s321 = sand.u32 %s225, 1
        %s322 = scalar_lea.sflag [#allocation5], %s321
        %s323 = sand.u32 %s225, 1
        %s324 = smul.addr %s323, 16
        %s325 = scalar_lea.vmem [#allocation4], %s324
        %p326 = scmp.lt.s32.totalorder %s23, 1
        %s327 = scalar_select %p326, %s23, 1
        %s328 = smul.addr %s327, 5
        %s329 = smul.addr %s328, 8
        %s330 = scalar_lea.vmem %s0, %s329
        %v331 = vld [vmem:[%s330] sm:$0xf]
        %v332 = vld [vmem:[%s330 + $0x8] sm:$0xf]
        %v333 = vld [vmem:[%s330 + $0x10] sm:$0xf]
        %v334 = vld [vmem:[%s330 + $0x18] sm:$0xf]
        %v335 = vld [vmem:[%s330 + $0x1] sm:$0xf]
        %v336 = vld [vmem:[%s330 + $0x9] sm:$0xf]
        %v337 = vld [vmem:[%s330 + $0x11] sm:$0xf]
        %v338 = vld [vmem:[%s330 + $0x19] sm:$0xf]
        %s339 = scalar_lea.vmem %s330, 8
        %v340 = vld [vmem:[%s339] sm:$0xf]
        %v341 = vld [vmem:[%s339 + $0x8] sm:$0xf]
        %v342 = vld [vmem:[%s339 + $0x10] sm:$0xf]
        %v343 = vld [vmem:[%s339 + $0x18] sm:$0xf]
        %v344 = vld [vmem:[%s339 + $0x1] sm:$0xf]
        %v345 = vld [vmem:[%s339 + $0x9] sm:$0xf]
        %v346 = vld [vmem:[%s339 + $0x11] sm:$0xf]
        %v347 = vld [vmem:[%s339 + $0x19] sm:$0xf]
        %352 = vrot.lane.b32.xlu0 %v335, 48
        %v353 = vpop.permute.xlu0 %352
        %354 = vrot.lane.b32.xlu0 %v336, 48
        %v355 = vpop.permute.xlu0 %354
        %356 = vrot.lane.b32.xlu0 %v337, 48
        %v357 = vpop.permute.xlu0 %356
        %358 = vrot.lane.b32.xlu0 %v338, 48
        %v359 = vpop.permute.xlu0 %358
        %368 = vrot.lane.b32.xlu0 %v340, 96
        %v369 = vpop.permute.xlu0 %368
        %370 = vrot.lane.b32.xlu0 %v341, 96
        %v371 = vpop.permute.xlu0 %370
        %372 = vrot.lane.b32.xlu0 %v342, 96
        %v373 = vpop.permute.xlu0 %372
        %374 = vrot.lane.b32.xlu0 %v343, 96
        %v375 = vpop.permute.xlu0 %374
        %384 = vrot.lane.b32.xlu0 %v344, 16
        %v385 = vpop.permute.xlu0 %384
        %386 = vrot.lane.b32.xlu0 %v345, 16
        %v387 = vpop.permute.xlu0 %386
        %388 = vrot.lane.b32.xlu0 %v346, 16
        %v389 = vpop.permute.xlu0 %388
        %390 = vrot.lane.b32.xlu0 %v347, 16
        %v391 = vpop.permute.xlu0 %390
        %vm396 = vcmask 392192
        %v397 = vsel %vm396, %v331, %v353
        %v398 = vsel %vm396, %v332, %v355
        %v399 = vsel %vm396, %v333, %v357
        %v400 = vsel %vm396, %v334, %v359
        %vm401 = vcmask 785408
        %v402 = vsel %vm401, %v397, %v369
        %v403 = vsel %vm401, %v398, %v371
        %v404 = vsel %vm401, %v399, %v373
        %v405 = vsel %vm401, %v400, %v375
        %vm406 = vcmask 130048
        %v407 = vsel %vm406, %v369, %v385
        %v408 = vsel %vm406, %v371, %v387
        %v409 = vsel %vm406, %v373, %v389
        %v410 = vsel %vm406, %v375, %v391
        %v419 = vcombine.low %v402, %v407
        %v420 = vcombine.low %v403, %v408
        %v421 = vcombine.low %v404, %v409
        %v422 = vcombine.low %v405, %v410
        %v423 = vld [vmem:[%s1] sm:$0xff]
        %v424 = vld [vmem:[%s1 + $0x8] sm:$0xff]
        %v425 = vld [vmem:[%s1 + $0x10] sm:$0xff]
        %v426 = vld [vmem:[%s1 + $0x18] sm:$0xff]
        %v427 = vld [vmem:[%s1 + $0x20] sm:$0xff]
        %v428 = vld [vmem:[%s1 + $0x28] sm:$0xff]
        %v429 = vld [vmem:[%s1 + $0x30] sm:$0xff]
        %v430 = vld [vmem:[%s1 + $0x38] sm:$0xff]
        %v431 = vld [vmem:[%s1 + $0x40] sm:$0xff]
        %v432 = vld [vmem:[%s1 + $0x48] sm:$0xff]
        %v433 = vld [vmem:[%s1 + $0x50] sm:$0xff]
        %v434 = vld [vmem:[%s1 + $0x58] sm:$0xff]
        %v435 = vld [vmem:[%s1 + $0x60] sm:$0xff]
        %v436 = vld [vmem:[%s1 + $0x68] sm:$0xff]
        %v437 = vld [vmem:[%s1 + $0x70] sm:$0xff]
        %v438 = vld [vmem:[%s1 + $0x78] sm:$0xff]
        %v439 = vld [vmem:[%s1 + $0x80] sm:$0xff]
        %v440 = vld [vmem:[%s1 + $0x88] sm:$0xff]
        %v441 = vld [vmem:[%s1 + $0x90] sm:$0xff]
        %v442 = vld [vmem:[%s1 + $0x98] sm:$0xff]
        %v443 = vld [vmem:[%s1 + $0xa0] sm:$0xff]
        %v444 = vld [vmem:[%s1 + $0xa8] sm:$0xff]
        %v445 = vld [vmem:[%s1 + $0xb0] sm:$0xff]
        %v446 = vld [vmem:[%s1 + $0xb8] sm:$0xff]
        %v447 = vld [vmem:[%s2] sm:$0x1]
        %v449 = vlaneseq
        %v450 = vshrl.u32 %v449, 7
        %v451 = vsub.s32 0, %v450
        %v452 = vrot.slane %v447, %v451
        %v454 = vcombine.low %v419, %v420
        %v455 = vcombine.high %v419, %v420
        %v456 = vcombine.low %v421, %v422
        %v457 = vcombine.high %v421, %v422
        %vm460 = vcmask 523264
        %v461 = vsel %vm460, %v455, 0
        %v463 = vsel %vm460, %v457, 0
        %465 = vmatprep.subr.mxu0 0.0
        %466 = vmatpush1.msra.mxu0 %v423
        %467 = vmatprep.subr.mxu0 0.0
        %468 = vmatpush1.msra.mxu0 %v424
        %469 = vmatprep.subr.mxu0 0.0
        %470 = vmatpush1.msra.mxu0 %v425
        %471 = vmatprep.subr.mxu0 0.0
        %472 = vmatpush1.msra.mxu0 %v426
        %473 = vmatprep.subr.mxu0 0.0
        %474 = vmatpush1.msra.mxu0 %v427
        %475 = vmatprep.subr.mxu0 0.0
        %476 = vmatpush1.msra.mxu0 %v428
        %477 = vmatprep.subr.mxu0 0.0
        %478 = vmatpush1.msra.mxu0 %v429
        %479 = vmatprep.subr.mxu0 0.0
        %480 = vmatpush1.msra.mxu0 %v430
        %481 = vmatprep.subr.mxu0 0.0
        %482 = vmatpush1.msra.mxu0 %v431
        %483 = vmatprep.subr.mxu0 0.0
        %484 = vmatpush1.msra.mxu0 %v432
        %485 = vmatprep.subr.mxu0 0.0
        %486 = vmatpush1.msra.mxu0 %v433
        %487 = vmatprep.subr.mxu0 0.0
        %488 = vmatpush1.msra.mxu0 %v434
        %489 = vmatprep.subr.mxu0 0.0
        %490 = vmatpush1.msra.mxu0 %v435
        %491 = vmatprep.subr.mxu0 0.0
        %492 = vmatpush1.msra.mxu0 %v436
        %493 = vmatprep.subr.mxu0 0.0
        %494 = vmatpush1.msra.mxu0 %v437
        %495 = vmatprep.subr.mxu0 0.0
        %496 = vmatpush1.msra.mxu0 %v438
        %497 = vmatprep.subr.mxu0 0.0
        %498 = vmatpush1.msra.mxu0 %v439
        %499 = vmatprep.subr.mxu0 0.0
        %500 = vmatpush1.msra.mxu0 %v440
        %501 = vmatprep.subr.mxu0 0.0
        %502 = vmatpush1.msra.mxu0 %v441
        %503 = vmatprep.subr.mxu0 0.0
        %504 = vmatpush1.msra.mxu0 %v442
        %505 = vmatprep.subr.mxu0 0.0
        %506 = vmatpush1.msra.mxu0 %v443
        %507 = vmatprep.subr.mxu0 0.0
        %508 = vmatpush1.msra.mxu0 %v444
        %509 = vmatprep.subr.mxu0 0.0
        %510 = vmatpush1.msra.mxu0 %v445
        %511 = vmatprep.subr.mxu0 0.0
        %512 = vmatpush1.msra.mxu0 %v446
        %513 = vmatprep.subr.mxu0 0.0
        %514 = vmatpush1.msra.mxu0 0.0
        %515 = vmatprep.subr.mxu0 0.0
        %516 = vmatpush1.msra.mxu0 0.0
        %517 = vmatprep.subr.mxu0 0.0
        %518 = vmatpush1.msra.mxu0 0.0
        %519 = vmatprep.subr.mxu0 0.0
        %520 = vmatpush1.msra.mxu0 0.0
        %521 = vmatprep.subr.mxu0 0.0
        %522 = vmatpush1.msra.mxu0 0.0
        %523 = vmatprep.subr.mxu0 0.0
        %524 = vmatpush1.msra.mxu0 0.0
        %525 = vmatprep.subr.mxu0 0.0
        %526 = vmatpush1.msra.mxu0 0.0
        %527 = vmatprep.subr.mxu0 0.0
        %528 = vmatpush1.msra.mxu0 0.0
        %529 = vmatprep.mubr.f32.mxu0 %v461
        %530 = vmatmul.mubr.f32.gmra.mrb[0].mxu0 %v454
        %v531 = vpop.f32.mrb[0].mxu0
        %v532 = vadd.f32 %v452, %v531
        %v533 = vpop.f32.mrb[0].mxu0
        %534 = vmatprep.mubr.f32.mxu0 %v463
        %535 = vmatmul.mubr.f32.gmra.mrb[0].mxu0 %v456
        %v536 = vpop.f32.mrb[0].mxu0
        %v537 = vadd.f32 %v452, %v536
        %v538 = vpop.f32.mrb[0].mxu0
        %539 = vdwg.mxu0
        %v540 = vmax.f32 %v532, 0.0
        %v541 = vmax.f32 %v537, 0.0
        %vm542 = vcmask 258048
        %543 = vst.msk [vmem:[#allocation2] sm:$0x1f] %vm542, 0.0
        %544 = vst.msk [vmem:[#allocation2 + $0x8] sm:$0x1f] %vm542, 0.0
        %545 = vst.msk [vmem:[#allocation2 + $0x10] sm:$0x1f] %vm542, 0.0
        %546 = vst.msk [vmem:[#allocation2 + $0x18] sm:$0x1f] %vm542, 0.0
        %547 = vst.msk [vmem:[#allocation2 + $0x20] sm:$0x1f] %vm542, 0.0
        %v550 = vcombine.high %v540, %v540
        %v551 = vcombine.high %v541, %v541
        %s554 = scalar_lea.vmem [#allocation2], 8
        %vm555 = vcmask 257024
        %556 = vst.msk [vmem:[%s554 + $0x1] sm:$0xf] %vm555, %v540
        %557 = vst.msk [vmem:[%s554 + $0x9] sm:$0xf] %vm555, %v550
        %558 = vst.msk [vmem:[%s554 + $0x11] sm:$0xf] %vm555, %v541
        %559 = vst.msk [vmem:[%s554 + $0x19] sm:$0xf] %vm555, %v551
        %v560 = vld [vmem:[#allocation2] sm:$0xf]
        %v561 = vld [vmem:[#allocation2 + $0x8] sm:$0xf]
        %v562 = vld [vmem:[#allocation2 + $0x10] sm:$0xf]
        %v563 = vld [vmem:[#allocation2 + $0x18] sm:$0xf]
        %v564 = vld [vmem:[#allocation2 + $0x1] sm:$0xf]
        %v565 = vld [vmem:[#allocation2 + $0x9] sm:$0xf]
        %v566 = vld [vmem:[#allocation2 + $0x11] sm:$0xf]
        %v567 = vld [vmem:[#allocation2 + $0x19] sm:$0xf]
        %v568 = vld [vmem:[%s554] sm:$0xf]
        %v569 = vld [vmem:[%s554 + $0x8] sm:$0xf]
        %v570 = vld [vmem:[%s554 + $0x10] sm:$0xf]
        %v571 = vld [vmem:[%s554 + $0x18] sm:$0xf]
        %v572 = vld [vmem:[%s554 + $0x1] sm:$0xf]
        %v573 = vld [vmem:[%s554 + $0x9] sm:$0xf]
        %v574 = vld [vmem:[%s554 + $0x11] sm:$0xf]
        %v575 = vld [vmem:[%s554 + $0x19] sm:$0xf]
        %580 = vrot.lane.b32.xlu0 %v564, 32
        %v581 = vpop.permute.xlu0 %580
        %582 = vrot.lane.b32.xlu0 %v565, 32
        %v583 = vpop.permute.xlu0 %582
        %584 = vrot.lane.b32.xlu0 %v566, 32
        %v585 = vpop.permute.xlu0 %584
        %586 = vrot.lane.b32.xlu0 %v567, 32
        %v587 = vpop.permute.xlu0 %586
        %596 = vrot.lane.b32.xlu0 %v568, 64
        %v597 = vpop.permute.xlu0 %596
        %598 = vrot.lane.b32.xlu0 %v569, 64
        %v599 = vpop.permute.xlu0 %598
        %600 = vrot.lane.b32.xlu0 %v570, 64
        %v601 = vpop.permute.xlu0 %600
        %602 = vrot.lane.b32.xlu0 %v571, 64
        %v603 = vpop.permute.xlu0 %602
        %612 = vrot.lane.b32.xlu0 %v572, 96
        %v613 = vpop.permute.xlu0 %612
        %614 = vrot.lane.b32.xlu0 %v573, 96
        %v615 = vpop.permute.xlu0 %614
        %616 = vrot.lane.b32.xlu0 %v574, 96
        %v617 = vpop.permute.xlu0 %616
        %618 = vrot.lane.b32.xlu0 %v575, 96
        %v619 = vpop.permute.xlu0 %618
        %vm624 = vcmask 261120
        %v625 = vsel %vm624, %v560, %v581
        %v626 = vsel %vm624, %v561, %v583
        %v627 = vsel %vm624, %v562, %v585
        %v628 = vsel %vm624, %v563, %v587
        %v629 = vsel %vm460, %v625, %v597
        %v630 = vsel %vm460, %v626, %v599
        %v631 = vsel %vm460, %v627, %v601
        %v632 = vsel %vm460, %v628, %v603
        %v633 = vsel %vm401, %v629, %v613
        %v634 = vsel %vm401, %v630, %v615
        %v635 = vsel %vm401, %v631, %v617
        %v636 = vsel %vm401, %v632, %v619
        %v637 = vld [vmem:[%s3] sm:$0xff]
        %v638 = vld [vmem:[%s3 + $0x8] sm:$0xff]
        %v639 = vld [vmem:[%s3 + $0x10] sm:$0xff]
        %v640 = vld [vmem:[%s3 + $0x18] sm:$0xff]
        %v641 = vld [vmem:[%s3 + $0x20] sm:$0xff]
        %v642 = vld [vmem:[%s3 + $0x28] sm:$0xff]
        %v643 = vld [vmem:[%s3 + $0x30] sm:$0xff]
        %v644 = vld [vmem:[%s3 + $0x38] sm:$0xff]
        %v645 = vld [vmem:[%s3 + $0x40] sm:$0xff]
        %v646 = vld [vmem:[%s3 + $0x48] sm:$0xff]
        %v647 = vld [vmem:[%s3 + $0x50] sm:$0xff]
        %v648 = vld [vmem:[%s3 + $0x58] sm:$0xff]
        %v649 = vld [vmem:[%s3 + $0x60] sm:$0xff]
        %v650 = vld [vmem:[%s3 + $0x68] sm:$0xff]
        %v651 = vld [vmem:[%s3 + $0x70] sm:$0xff]
        %v652 = vld [vmem:[%s3 + $0x78] sm:$0xff]
        %v653 = vld [vmem:[%s4] sm:$0x1]
        %v655 = vlaneseq
        %v656 = vshrl.u32 %v655, 7
        %v657 = vsub.s32 0, %v656
        %v658 = vrot.slane %v653, %v657
        %v664 = vcombine.low %v633, %v634
        %v665 = vcombine.low %v635, %v636
        %668 = vmatprep.subr.mxu0 0.0
        %669 = vmatpush1.msra.mxu0 %v637
        %670 = vmatprep.subr.mxu0 0.0
        %671 = vmatpush1.msra.mxu0 %v638
        %672 = vmatprep.subr.mxu0 0.0
        %673 = vmatpush1.msra.mxu0 %v639
        %674 = vmatprep.subr.mxu0 0.0
        %675 = vmatpush1.msra.mxu0 %v640
        %676 = vmatprep.subr.mxu0 0.0
        %677 = vmatpush1.msra.mxu0 %v641
        %678 = vmatprep.subr.mxu0 0.0
        %679 = vmatpush1.msra.mxu0 %v642
        %680 = vmatprep.subr.mxu0 0.0
        %681 = vmatpush1.msra.mxu0 %v643
        %682 = vmatprep.subr.mxu0 0.0
        %683 = vmatpush1.msra.mxu0 %v644
        %684 = vmatprep.subr.mxu0 0.0
        %685 = vmatpush1.msra.mxu0 %v645
        %686 = vmatprep.subr.mxu0 0.0
        %687 = vmatpush1.msra.mxu0 %v646
        %688 = vmatprep.subr.mxu0 0.0
        %689 = vmatpush1.msra.mxu0 %v647
        %690 = vmatprep.subr.mxu0 0.0
        %691 = vmatpush1.msra.mxu0 %v648
        %692 = vmatprep.subr.mxu0 0.0
        %693 = vmatpush1.msra.mxu0 %v649
        %694 = vmatprep.subr.mxu0 0.0
        %695 = vmatpush1.msra.mxu0 %v650
        %696 = vmatprep.subr.mxu0 0.0
        %697 = vmatpush1.msra.mxu0 %v651
        %698 = vmatprep.subr.mxu0 0.0
        %699 = vmatpush1.msra.mxu0 %v652
        %700 = vmatprep.subr.mxu0 0.0
        %701 = vmatpush1.msra.mxu0 0.0
        %702 = vmatprep.subr.mxu0 0.0
        %703 = vmatpush1.msra.mxu0 0.0
        %704 = vmatprep.subr.mxu0 0.0
        %705 = vmatpush1.msra.mxu0 0.0
        %706 = vmatprep.subr.mxu0 0.0
        %707 = vmatpush1.msra.mxu0 0.0
        %708 = vmatprep.subr.mxu0 0.0
        %709 = vmatpush1.msra.mxu0 0.0
        %710 = vmatprep.subr.mxu0 0.0
        %711 = vmatpush1.msra.mxu0 0.0
        %712 = vmatprep.subr.mxu0 0.0
        %713 = vmatpush1.msra.mxu0 0.0
        %714 = vmatprep.subr.mxu0 0.0
        %715 = vmatpush1.msra.mxu0 0.0
        %716 = vmatprep.subr.mxu0 0.0
        %717 = vmatpush1.msra.mxu0 0.0
        %718 = vmatprep.subr.mxu0 0.0
        %719 = vmatpush1.msra.mxu0 0.0
        %720 = vmatprep.subr.mxu0 0.0
        %721 = vmatpush1.msra.mxu0 0.0
        %722 = vmatprep.subr.mxu0 0.0
        %723 = vmatpush1.msra.mxu0 0.0
        %724 = vmatprep.subr.mxu0 0.0
        %725 = vmatpush1.msra.mxu0 0.0
        %726 = vmatprep.subr.mxu0 0.0
        %727 = vmatpush1.msra.mxu0 0.0
        %728 = vmatprep.subr.mxu0 0.0
        %729 = vmatpush1.msra.mxu0 0.0
        %730 = vmatprep.subr.mxu0 0.0
        %731 = vmatpush1.msra.mxu0 0.0
        %732 = vmatprep.mubr.f32.mxu0 0.0
        %733 = vmatmul.mubr.f32.gmra.mrb[0].mxu0 %v664
        %v734 = vpop.f32.mrb[0].mxu0
        %v735 = vadd.f32 %v658, %v734
        %v736 = vpop.f32.mrb[0].mxu0
        %737 = vmatprep.mubr.f32.mxu0 0.0
        %738 = vmatmul.mubr.f32.gmra.mrb[0].mxu0 %v665
        %v739 = vpop.f32.mrb[0].mxu0
        %v740 = vadd.f32 %v658, %v739
        %v741 = vpop.f32.mrb[0].mxu0
        %742 = vdwg.mxu0
        %v743 = vmax.f32 %v735, 0.0
        %v744 = vmax.f32 %v740, 0.0
        %vm745 = vcmask 128000
        %746 = vst.msk [vmem:[#allocation3] sm:$0x3f] %vm745, 0.0
        %747 = vst.msk [vmem:[#allocation3 + $0x8] sm:$0x3f] %vm745, 0.0
        %748 = vst.msk [vmem:[#allocation3 + $0x10] sm:$0x3f] %vm745, 0.0
        %749 = vst.msk [vmem:[#allocation3 + $0x18] sm:$0x3f] %vm745, 0.0
        %750 = vst.msk [vmem:[#allocation3 + $0x20] sm:$0x3f] %vm745, 0.0
        %751 = vst.msk [vmem:[#allocation3 + $0x28] sm:$0x3f] %vm745, 0.0
        %v754 = vcombine.high %v743, %v743
        %v755 = vcombine.high %v744, %v744
        %s758 = scalar_lea.vmem [#allocation3], 8
        %vm759 = vcmask 125952
        %760 = vst.msk [vmem:[%s758 + $0x1] sm:$0xf] %vm759, %v743
        %761 = vst.msk [vmem:[%s758 + $0x9] sm:$0xf] %vm759, %v754
        %762 = vst.msk [vmem:[%s758 + $0x11] sm:$0xf] %vm759, %v744
        %763 = vst.msk [vmem:[%s758 + $0x19] sm:$0xf] %vm759, %v755
        %v764 = vld [vmem:[#allocation3] sm:$0xf]
        %v765 = vld [vmem:[#allocation3 + $0x8] sm:$0xf]
        %v766 = vld [vmem:[#allocation3 + $0x10] sm:$0xf]
        %v767 = vld [vmem:[#allocation3 + $0x18] sm:$0xf]
        %v768 = vld [vmem:[#allocation3 + $0x1] sm:$0xf]
        %v769 = vld [vmem:[#allocation3 + $0x9] sm:$0xf]
        %v770 = vld [vmem:[#allocation3 + $0x11] sm:$0xf]
        %v771 = vld [vmem:[#allocation3 + $0x19] sm:$0xf]
        %v772 = vld [vmem:[#allocation3 + $0x2] sm:$0xf]
        %v773 = vld [vmem:[#allocation3 + $0xa] sm:$0xf]
        %v774 = vld [vmem:[#allocation3 + $0x12] sm:$0xf]
        %v775 = vld [vmem:[#allocation3 + $0x1a] sm:$0xf]
        %v776 = vld [vmem:[%s758] sm:$0xf]
        %v777 = vld [vmem:[%s758 + $0x8] sm:$0xf]
        %v778 = vld [vmem:[%s758 + $0x10] sm:$0xf]
        %v779 = vld [vmem:[%s758 + $0x18] sm:$0xf]
        %v780 = vld [vmem:[%s758 + $0x1] sm:$0xf]
        %v781 = vld [vmem:[%s758 + $0x9] sm:$0xf]
        %v782 = vld [vmem:[%s758 + $0x11] sm:$0xf]
        %v783 = vld [vmem:[%s758 + $0x19] sm:$0xf]
        %v784 = vld [vmem:[%s758 + $0x2] sm:$0xf]
        %v785 = vld [vmem:[%s758 + $0xa] sm:$0xf]
        %v786 = vld [vmem:[%s758 + $0x12] sm:$0xf]
        %v787 = vld [vmem:[%s758 + $0x1a] sm:$0xf]
        %s788 = scalar_lea.vmem [#allocation3], 16
        %v789 = vld [vmem:[%s788] sm:$0xf]
        %v790 = vld [vmem:[%s788 + $0x8] sm:$0xf]
        %v791 = vld [vmem:[%s788 + $0x10] sm:$0xf]
        %v792 = vld [vmem:[%s788 + $0x18] sm:$0xf]
        %v793 = vld [vmem:[%s788 + $0x1] sm:$0xf]
        %v794 = vld [vmem:[%s788 + $0x9] sm:$0xf]
        %v795 = vld [vmem:[%s788 + $0x11] sm:$0xf]
        %v796 = vld [vmem:[%s788 + $0x19] sm:$0xf]
        %v797 = vld [vmem:[%s788 + $0x2] sm:$0xf]
        %v798 = vld [vmem:[%s788 + $0xa] sm:$0xf]
        %v799 = vld [vmem:[%s788 + $0x12] sm:$0xf]
        %v800 = vld [vmem:[%s788 + $0x1a] sm:$0xf]
        %805 = vrot.lane.b32.xlu0 %v768, 16
        %v806 = vpop.permute.xlu0 %805
        %807 = vrot.lane.b32.xlu0 %v769, 16
        %v808 = vpop.permute.xlu0 %807
        %809 = vrot.lane.b32.xlu0 %v770, 16
        %v810 = vpop.permute.xlu0 %809
        %811 = vrot.lane.b32.xlu0 %v771, 16
        %v812 = vpop.permute.xlu0 %811
        %821 = vrot.lane.b32.xlu0 %v772, 32
        %v822 = vpop.permute.xlu0 %821
        %823 = vrot.lane.b32.xlu0 %v773, 32
        %v824 = vpop.permute.xlu0 %823
        %825 = vrot.lane.b32.xlu0 %v774, 32
        %v826 = vpop.permute.xlu0 %825
        %827 = vrot.lane.b32.xlu0 %v775, 32
        %v828 = vpop.permute.xlu0 %827
        %837 = vrot.lane.b32.xlu0 %v776, 48
        %v838 = vpop.permute.xlu0 %837
        %839 = vrot.lane.b32.xlu0 %v777, 48
        %v840 = vpop.permute.xlu0 %839
        %841 = vrot.lane.b32.xlu0 %v778, 48
        %v842 = vpop.permute.xlu0 %841
        %843 = vrot.lane.b32.xlu0 %v779, 48
        %v844 = vpop.permute.xlu0 %843
        %853 = vrot.lane.b32.xlu0 %v780, 64
        %v854 = vpop.permute.xlu0 %853
        %855 = vrot.lane.b32.xlu0 %v781, 64
        %v856 = vpop.permute.xlu0 %855
        %857 = vrot.lane.b32.xlu0 %v782, 64
        %v858 = vpop.permute.xlu0 %857
        %859 = vrot.lane.b32.xlu0 %v783, 64
        %v860 = vpop.permute.xlu0 %859
        %869 = vrot.lane.b32.xlu0 %v784, 80
        %v870 = vpop.permute.xlu0 %869
        %871 = vrot.lane.b32.xlu0 %v785, 80
        %v872 = vpop.permute.xlu0 %871
        %873 = vrot.lane.b32.xlu0 %v786, 80
        %v874 = vpop.permute.xlu0 %873
        %875 = vrot.lane.b32.xlu0 %v787, 80
        %v876 = vpop.permute.xlu0 %875
        %885 = vrot.lane.b32.xlu0 %v789, 96
        %v886 = vpop.permute.xlu0 %885
        %887 = vrot.lane.b32.xlu0 %v790, 96
        %v888 = vpop.permute.xlu0 %887
        %889 = vrot.lane.b32.xlu0 %v791, 96
        %v890 = vpop.permute.xlu0 %889
        %891 = vrot.lane.b32.xlu0 %v792, 96
        %v892 = vpop.permute.xlu0 %891
        %901 = vrot.lane.b32.xlu0 %v793, 112
        %v902 = vpop.permute.xlu0 %901
        %903 = vrot.lane.b32.xlu0 %v794, 112
        %v904 = vpop.permute.xlu0 %903
        %905 = vrot.lane.b32.xlu0 %v795, 112
        %v906 = vpop.permute.xlu0 %905
        %907 = vrot.lane.b32.xlu0 %v796, 112
        %v908 = vpop.permute.xlu0 %907
        %v913 = vsel %vm406, %v764, %v806
        %v914 = vsel %vm406, %v765, %v808
        %v915 = vsel %vm406, %v766, %v810
        %v916 = vsel %vm406, %v767, %v812
        %v917 = vsel %vm624, %v913, %v822
        %v918 = vsel %vm624, %v914, %v824
        %v919 = vsel %vm624, %v915, %v826
        %v920 = vsel %vm624, %v916, %v828
        %v921 = vsel %vm396, %v917, %v838
        %v922 = vsel %vm396, %v918, %v840
        %v923 = vsel %vm396, %v919, %v842
        %v924 = vsel %vm396, %v920, %v844
        %v925 = vsel %vm460, %v921, %v854
        %v926 = vsel %vm460, %v922, %v856
        %v927 = vsel %vm460, %v923, %v858
        %v928 = vsel %vm460, %v924, %v860
        %vm929 = vcmask 654336
        %v930 = vsel %vm929, %v925, %v870
        %v931 = vsel %vm929, %v926, %v872
        %v932 = vsel %vm929, %v927, %v874
        %v933 = vsel %vm929, %v928, %v876
        %v934 = vsel %vm401, %v930, %v886
        %v935 = vsel %vm401, %v931, %v888
        %v936 = vsel %vm401, %v932, %v890
        %v937 = vsel %vm401, %v933, %v892
        %vm938 = vcmask 916480
        %v939 = vsel %vm938, %v934, %v902
        %v940 = vsel %vm938, %v935, %v904
        %v941 = vsel %vm938, %v936, %v906
        %v942 = vsel %vm938, %v937, %v908
        %v951 = vcombine.low %v939, %v797
        %v952 = vcombine.low %v940, %v798
        %v953 = vcombine.low %v941, %v799
        %v954 = vcombine.low %v942, %v800
        %v955 = vld [vmem:[%s5] sm:$0xff]
        %v956 = vld [vmem:[%s5 + $0x8] sm:$0xff]
        %v957 = vld [vmem:[%s5 + $0x10] sm:$0xff]
        %v958 = vld [vmem:[%s5 + $0x18] sm:$0xff]
        %v959 = vld [vmem:[%s5 + $0x20] sm:$0xff]
        %v960 = vld [vmem:[%s5 + $0x28] sm:$0xff]
        %v961 = vld [vmem:[%s5 + $0x30] sm:$0xff]
        %v962 = vld [vmem:[%s5 + $0x38] sm:$0xff]
        %v963 = vld [vmem:[%s5 + $0x40] sm:$0xff]
        %v964 = vld [vmem:[%s5 + $0x48] sm:$0xff]
        %v965 = vld [vmem:[%s5 + $0x50] sm:$0xff]
        %v966 = vld [vmem:[%s5 + $0x58] sm:$0xff]
        %v967 = vld [vmem:[%s5 + $0x60] sm:$0xff]
        %v968 = vld [vmem:[%s5 + $0x68] sm:$0xff]
        %v969 = vld [vmem:[%s5 + $0x70] sm:$0xff]
        %v970 = vld [vmem:[%s5 + $0x78] sm:$0xff]
        %v971 = vld [vmem:[%s5 + $0x80] sm:$0xff]
        %v972 = vld [vmem:[%s5 + $0x88] sm:$0xff]
        %v973 = vld [vmem:[%s6] sm:$0x1]
        %v975 = vlaneseq
        %v976 = vshrl.u32 %v975, 7
        %v977 = vsub.s32 0, %v976
        %v978 = vrot.slane %v973, %v977
        %v980 = vcombine.low %v951, %v952
        %v981 = vcombine.high %v951, %v952
        %v982 = vcombine.low %v953, %v954
        %v983 = vcombine.high %v953, %v954
        %v986 = vsel %vm406, %v981, 0
        %v988 = vsel %vm406, %v983, 0
        %990 = vmatprep.subr.mxu0 0.0
        %991 = vmatpush1.msra.mxu0 %v955
        %992 = vmatprep.subr.mxu0 0.0
        %993 = vmatpush1.msra.mxu0 %v956
        %994 = vmatprep.subr.mxu0 0.0
        %995 = vmatpush1.msra.mxu0 %v957
        %996 = vmatprep.subr.mxu0 0.0
        %997 = vmatpush1.msra.mxu0 %v958
        %998 = vmatprep.subr.mxu0 0.0
        %999 = vmatpush1.msra.mxu0 %v959
        %1000 = vmatprep.subr.mxu0 0.0
        %1001 = vmatpush1.msra.mxu0 %v960
        %1002 = vmatprep.subr.mxu0 0.0
        %1003 = vmatpush1.msra.mxu0 %v961
        %1004 = vmatprep.subr.mxu0 0.0
        %1005 = vmatpush1.msra.mxu0 %v962
        %1006 = vmatprep.subr.mxu0 0.0
        %1007 = vmatpush1.msra.mxu0 %v963
        %1008 = vmatprep.subr.mxu0 0.0
        %1009 = vmatpush1.msra.mxu0 %v964
        %1010 = vmatprep.subr.mxu0 0.0
        %1011 = vmatpush1.msra.mxu0 %v965
        %1012 = vmatprep.subr.mxu0 0.0
        %1013 = vmatpush1.msra.mxu0 %v966
        %1014 = vmatprep.subr.mxu0 0.0
        %1015 = vmatpush1.msra.mxu0 %v967
        %1016 = vmatprep.subr.mxu0 0.0
        %1017 = vmatpush1.msra.mxu0 %v968
        %1018 = vmatprep.subr.mxu0 0.0
        %1019 = vmatpush1.msra.mxu0 %v969
        %1020 = vmatprep.subr.mxu0 0.0
        %1021 = vmatpush1.msra.mxu0 %v970
        %1022 = vmatprep.subr.mxu0 0.0
        %1023 = vmatpush1.msra.mxu0 %v971
        %1024 = vmatprep.subr.mxu0 0.0
        %1025 = vmatpush1.msra.mxu0 %v972
        %1026 = vmatprep.subr.mxu0 0.0
        %1027 = vmatpush1.msra.mxu0 0.0
        %1028 = vmatprep.subr.mxu0 0.0
        %1029 = vmatpush1.msra.mxu0 0.0
        %1030 = vmatprep.subr.mxu0 0.0
        %1031 = vmatpush1.msra.mxu0 0.0
        %1032 = vmatprep.subr.mxu0 0.0
        %1033 = vmatpush1.msra.mxu0 0.0
        %1034 = vmatprep.subr.mxu0 0.0
        %1035 = vmatpush1.msra.mxu0 0.0
        %1036 = vmatprep.subr.mxu0 0.0
        %1037 = vmatpush1.msra.mxu0 0.0
        %1038 = vmatprep.subr.mxu0 0.0
        %1039 = vmatpush1.msra.mxu0 0.0
        %1040 = vmatprep.subr.mxu0 0.0
        %1041 = vmatpush1.msra.mxu0 0.0
        %1042 = vmatprep.subr.mxu0 0.0
        %1043 = vmatpush1.msra.mxu0 0.0
        %1044 = vmatprep.subr.mxu0 0.0
        %1045 = vmatpush1.msra.mxu0 0.0
        %1046 = vmatprep.subr.mxu0 0.0
        %1047 = vmatpush1.msra.mxu0 0.0
        %1048 = vmatprep.subr.mxu0 0.0
        %1049 = vmatpush1.msra.mxu0 0.0
        %1050 = vmatprep.subr.mxu0 0.0
        %1051 = vmatpush1.msra.mxu0 0.0
        %1052 = vmatprep.subr.mxu0 0.0
        %1053 = vmatpush1.msra.mxu0 0.0
        %1054 = vmatprep.mubr.f32.mxu0 %v986
        %1055 = vmatmul.mubr.f32.gmra.mrb[0].mxu0 %v980
        %v1056 = vpop.f32.mrb[0].mxu0
        %v1057 = vadd.f32 %v978, %v1056
        %v1058 = vpop.f32.mrb[0].mxu0
        %1059 = vmatprep.mubr.f32.mxu0 %v988
        %1060 = vmatmul.mubr.f32.gmra.mrb[0].mxu0 %v982
        %v1061 = vpop.f32.mrb[0].mxu0
        %v1062 = vadd.f32 %v978, %v1061
        %v1063 = vpop.f32.mrb[0].mxu0
        %1064 = vdwg.mxu0
        %v1065 = vmax.f32 %v1057, 0.0
        %v1066 = vmax.f32 %v1062, 0.0
        %v1067 = vld [vmem:[%s7] sm:$0xff]
        %v1068 = vld [vmem:[%s7 + $0x8] sm:$0xff]
        %v1069 = vld [vmem:[%s8] sm:$0x1]
        %v1071 = vlaneseq
        %v1072 = vshrl.u32 %v1071, 7
        %v1073 = vsub.s32 0, %v1072
        %v1074 = vrot.slane %v1069, %v1073
        %v1077 = vsel %vm406, %v1065, 0
        %v1080 = vsel %vm406, %v1066, 0
        %1082 = vmatprep.subr.mxu0 0.0
        %1083 = vmatpush1.msra.mxu0 %v1067
        %1084 = vmatprep.subr.mxu0 0.0
        %1085 = vmatpush1.msra.mxu0 %v1068
        %1086 = vmatprep.subr.mxu0 0.0
        %1087 = vmatpush1.msra.mxu0 0.0
        %1088 = vmatprep.subr.mxu0 0.0
        %1089 = vmatpush1.msra.mxu0 0.0
        %1090 = vmatprep.subr.mxu0 0.0
        %1091 = vmatpush1.msra.mxu0 0.0
        %1092 = vmatprep.subr.mxu0 0.0
        %1093 = vmatpush1.msra.mxu0 0.0
        %1094 = vmatprep.subr.mxu0 0.0
        %1095 = vmatpush1.msra.mxu0 0.0
        %1096 = vmatprep.subr.mxu0 0.0
        %1097 = vmatpush1.msra.mxu0 0.0
        %1098 = vmatprep.subr.mxu0 0.0
        %1099 = vmatpush1.msra.mxu0 0.0
        %1100 = vmatprep.subr.mxu0 0.0
        %1101 = vmatpush1.msra.mxu0 0.0
        %1102 = vmatprep.subr.mxu0 0.0
        %1103 = vmatpush1.msra.mxu0 0.0
        %1104 = vmatprep.subr.mxu0 0.0
        %1105 = vmatpush1.msra.mxu0 0.0
        %1106 = vmatprep.subr.mxu0 0.0
        %1107 = vmatpush1.msra.mxu0 0.0
        %1108 = vmatprep.subr.mxu0 0.0
        %1109 = vmatpush1.msra.mxu0 0.0
        %1110 = vmatprep.subr.mxu0 0.0
        %1111 = vmatpush1.msra.mxu0 0.0
        %1112 = vmatprep.subr.mxu0 0.0
        %1113 = vmatpush1.msra.mxu0 0.0
        %1114 = vmatprep.subr.mxu0 0.0
        %1115 = vmatpush1.msra.mxu0 0.0
        %1116 = vmatprep.subr.mxu0 0.0
        %1117 = vmatpush1.msra.mxu0 0.0
        %1118 = vmatprep.subr.mxu0 0.0
        %1119 = vmatpush1.msra.mxu0 0.0
        %1120 = vmatprep.subr.mxu0 0.0
        %1121 = vmatpush1.msra.mxu0 0.0
        %1122 = vmatprep.subr.mxu0 0.0
        %1123 = vmatpush1.msra.mxu0 0.0
        %1124 = vmatprep.subr.mxu0 0.0
        %1125 = vmatpush1.msra.mxu0 0.0
        %1126 = vmatprep.subr.mxu0 0.0
        %1127 = vmatpush1.msra.mxu0 0.0
        %1128 = vmatprep.subr.mxu0 0.0
        %1129 = vmatpush1.msra.mxu0 0.0
        %1130 = vmatprep.subr.mxu0 0.0
        %1131 = vmatpush1.msra.mxu0 0.0
        %1132 = vmatprep.subr.mxu0 0.0
        %1133 = vmatpush1.msra.mxu0 0.0
        %1134 = vmatprep.subr.mxu0 0.0
        %1135 = vmatpush1.msra.mxu0 0.0
        %1136 = vmatprep.subr.mxu0 0.0
        %1137 = vmatpush1.msra.mxu0 0.0
        %1138 = vmatprep.subr.mxu0 0.0
        %1139 = vmatpush1.msra.mxu0 0.0
        %1140 = vmatprep.subr.mxu0 0.0
        %1141 = vmatpush1.msra.mxu0 0.0
        %1142 = vmatprep.subr.mxu0 0.0
        %1143 = vmatpush1.msra.mxu0 0.0
        %1144 = vmatprep.subr.mxu0 0.0
        %1145 = vmatpush1.msra.mxu0 0.0
        %1146 = vmatprep.mubr.f32.mxu0 0.0
        %1147 = vmatmul.mubr.f32.gmra.mrb[0].mxu0 %v1077
        %v1148 = vpop.f32.mrb[0].mxu0
        %v1149 = vadd.f32 %v1074, %v1148
        %v1150 = vpop.f32.mrb[0].mxu0
        %1151 = vmatprep.mubr.f32.mxu0 0.0
        %1152 = vmatmul.mubr.f32.gmra.mrb[0].mxu0 %v1080
        %v1153 = vpop.f32.mrb[0].mxu0
        %v1154 = vadd.f32 %v1074, %v1153
        %v1155 = vpop.f32.mrb[0].mxu0
        %1156 = vdwg.mxu0
        %vm1157 = vcmask 97280
        %1158 = vst.msk [vmem:[%s325] sm:$0xff] %vm1157, %v1149
        %1159 = vst.msk [vmem:[%s325 + $0x8] sm:$0xff] %vm1157, %v1154
        %s1160 = sand.u32 %s225, 1
        %s1161 = scalar_lea.sflag [#allocation5], %s1160
        %s1162 = sand.u32 %s225, 1
        %s1163 = smul.addr %s1162, 16
        %s1164 = scalar_lea.vmem [#allocation4], %s1163
        // Predicated region
        $region57: #{detnet_forward.1} parent=55 // pred_check
          %p1165 = pneg %p235
        $region58: #{detnet_forward.1} parent=55 // pred_check_branch
          %1167 = sbr.rel (%p1165) target = $region60
        $region59: #{detnet_forward.1} parent=55 // pred_region
          %s1169 = ssub.s32 256, 256
          %1170 = vsyncadd %s1161, %s1169
          %s1171 = smul.addr %s23, 2
          %s1172 = smul.addr %s1171, 128
          %s1173 = scalar_lea.hbm %s9, %s1172
          %s1174 = sshll.u32 %s1164, 4
          %s1175 = int_to_ptr.vmem [resolvable:$true] %s1174
          %1180 = dma.vmem_to_hbm [thread:$0]  %s1175, 256, %s1173, %s1161, 128, 128, 8
        $region60: #{detnet_forward.1} parent=55 // pred_fallthru
          _
      $region56: #{detnet_forward.1} parent=5 // pred_fallthru
        _
      %p1181 = scmp.le.s32.totalorder 2, %s18
      // Predicated region
      $region61: #{detnet_forward.1} parent=5 // pred_check
        %p1182 = pneg %p1181
      $region62: #{detnet_forward.1} parent=5 // pred_check_branch
        %1184 = sbr.rel (%p1182) target = $region64
      $region63: #{detnet_forward.1} parent=5 // pred_region
        %s1185 = ssub.s32 %s18, 2
        // Predicated region
        $region65: #{detnet_forward.1} parent=63 // pred_check
          %p1186 = pneg %p241
        $region66: #{detnet_forward.1} parent=63 // pred_check_branch
          %1188 = sbr.rel (%p1186) target = $region68
        $region67: #{detnet_forward.1} parent=63 // pred_region
          %s1189 = sand.u32 %s226, 1
          %s1190 = scalar_lea.sflag [#allocation5], %s1189
          %s1191 = sand.u32 %s226, 1
          %s1192 = smul.addr %s1191, 16
          %s1193 = scalar_lea.vmem [#allocation4], %s1192
          %1194 = dma.done %s1190, 256
        $region68: #{detnet_forward.1} parent=63 // pred_fallthru
          _
      $region64: #{detnet_forward.1} parent=5 // pred_fallthru
        _
    $region6: #{detnet_forward.1} parent=1 // loop_footer
      %s22 = sadd.s32 1, %s18
    $region7: #{detnet_forward.1} parent=1 // loop_footer_branch
      %17 = sbr.rel target = $region3
    $region8: #{detnet_forward.1} parent=1 // loop_exit
      _
    %1195 = vsyncpa [#allocation5], 1
    %s1196 = scalar_lea.sflag [#allocation5], 1
    %1197 = vsyncpa %s1196, 1

</llo_original>
